<compile_context>
chip_gen: v7x
topology: tpu7x:2x2x1
jax: 0.10.0
libtpu: 0.0.40
codegen_flags: <defaults>
</compile_context>

<pallas_src>
import math

import jax
import jax.numpy as jnp
from jax.experimental import pallas as pl
from jax.experimental.pallas import tpu as pltpu

# ----------------------------- model config (small, BERT-like) -----------------------------
VOCAB = 100
MAX_POS = 64
HIDDEN = 32
NUM_HEADS = 2
HEAD_DIM = HIDDEN // NUM_HEADS
INTERMEDIATE = 64
NUM_LAYERS = 2
INTENT_LABELS = 5
SLOT_LABELS = 9
CLS_PAD = 128           # lane-dense combined classifier output width (intent | slot | zero pad)
LN_EPS = 1e-12          # BERT layer-norm epsilon


def _round_up(x, m):
    return ((x + m - 1) // m) * m


# Weight-slab row layout (bf16 sublane tile = 16 rows; keep every offset 16-aligned).
WORD_ROWS = _round_up(VOCAB, 16)                         # 112
LAYER_W_ROWS = 3 * HIDDEN + INTERMEDIATE                 # wqkv(32) + wo(32) + ff1(32) + ff2(64) = 160
W_QKV_OFF, W_WO_OFF, W_FF1_OFF, W_FF2_OFF = 0, HIDDEN, 2 * HIDDEN, 3 * HIDDEN
CLS_W_ROW = WORD_ROWS + NUM_LAYERS * LAYER_W_ROWS        # 432
RW = _round_up(CLS_W_ROW + HIDDEN, 16)                   # 464


def _vec_slab_layout(S):
    """Row layout of the f32 vector slab for a given sequence length."""
    s_pad = _round_up(S, 8)
    pos_row = 8                                          # rows [8, 8+S): pos+type embeddings
    layer_base = 8 + s_pad                               # 8 rows per layer
    cls_b_row = layer_base + NUM_LAYERS * 8
    rv = _round_up(cls_b_row + 1, 8)
    return pos_row, layer_base, cls_b_row, rv


# ------------------------------------ fused Pallas kernel ----------------------------------
def _make_fused_kernel(S):
    """Builds the per-batch fused embedding+encoder+classifier kernel."""
    scale = 1.0 / math.sqrt(HEAD_DIM)
    c_gelu = math.sqrt(2.0 / math.pi)
    pos_row, layer_v_base, cls_b_row, _ = _vec_slab_layout(S)
    nt_dims = (((1,), (1,)), ((), ()))                   # q @ k^T (contract last dims)

    def _ln(v, g, b):
        mu = jnp.mean(v, axis=-1, keepdims=True)
        d = v - mu
        var = jnp.mean(d * d, axis=-1, keepdims=True)
        return d * jax.lax.rsqrt(var + LN_EPS) * g + b

    def kernel(ids_ref, mask_ref, w_ref, v_ref, out_ref):
        # --- embedding: one-hot gather on the MXU + pos/type add + LayerNorm ---
        ids = ids_ref[0]                                                  # (S, 1) int32
        vocab_iota = jax.lax.broadcasted_iota(jnp.int32, (S, WORD_ROWS), 1)
        onehot = jnp.where(vocab_iota == ids, 1.0, 0.0).astype(jnp.bfloat16)   # (S, VOCAB_pad)
        word = jnp.dot(onehot, w_ref[0:WORD_ROWS, 0:HIDDEN],
                       preferred_element_type=jnp.float32)                # (S, H) f32
        x = word + v_ref[pos_row:pos_row + S, 0:HIDDEN]                   # + pos + type (precombined)
        x = _ln(x, v_ref[0:1, 0:HIDDEN], v_ref[1:2, 0:HIDDEN])

        # HF-style additive attention mask (computed once per batch element).
        add_mask = (1.0 - mask_ref[0]) * (-10000.0)                       # (1, S)

        # Static unroll over layers (NUM_LAYERS is tiny).
        for l in range(NUM_LAYERS):
            wb = WORD_ROWS + l * LAYER_W_ROWS
            vb = layer_v_base + l * 8

            # fused QKV projection: (S,H) x (H,128) lane-padded -> lane-dense qkv row
            qkv = jnp.dot(x.astype(jnp.bfloat16), w_ref[wb:wb + HIDDEN, :],
                          preferred_element_type=jnp.float32) + v_ref[vb:vb + 1, :]
            q = qkv[:, 0 * HIDDEN:1 * HIDDEN].astype(jnp.bfloat16)
            k = qkv[:, 1 * HIDDEN:2 * HIDDEN].astype(jnp.bfloat16)
            vv = qkv[:, 2 * HIDDEN:3 * HIDDEN].astype(jnp.bfloat16)

            # multi-head attention for this batch element (static head loop, 2-D dots)
            ctx_heads = []
            for h in range(NUM_HEADS):
                sl = slice(h * HEAD_DIM, (h + 1) * HEAD_DIM)
                qh, kh, vh = q[:, sl], k[:, sl], vv[:, sl]
                s = jax.lax.dot_general(qh, kh, nt_dims,
                                        preferred_element_type=jnp.float32)   # (S, S)
                s = s * scale + add_mask
                s = s - jnp.max(s, axis=-1, keepdims=True)
                p = jnp.exp(s)
                p = p * pl.reciprocal(jnp.sum(p, axis=-1, keepdims=True), approx=True)
                ctx_heads.append(jnp.dot(p.astype(jnp.bfloat16), vh,
                                         preferred_element_type=jnp.float32))
            ctx = jnp.concatenate(ctx_heads, axis=-1)                     # (S, H)

            # output projection + residual + LayerNorm
            attn = jnp.dot(ctx.astype(jnp.bfloat16),
                           w_ref[wb + W_WO_OFF:wb + W_WO_OFF + HIDDEN, 0:HIDDEN],
                           preferred_element_type=jnp.float32) + v_ref[vb + 1:vb + 2, 0:HIDDEN]
            x = _ln(x + attn, v_ref[vb + 2:vb + 3, 0:HIDDEN], v_ref[vb + 3:vb + 4, 0:HIDDEN])

            # FFN (GELU folded) + residual + LayerNorm
            h1 = jnp.dot(x.astype(jnp.bfloat16),
                         w_ref[wb + W_FF1_OFF:wb + W_FF1_OFF + HIDDEN, 0:INTERMEDIATE],
                         preferred_element_type=jnp.float32) + v_ref[vb + 4:vb + 5, 0:INTERMEDIATE]
            # TODO(synk): HF BERT uses exact erf-GELU; tanh approximation used here (EUP tanh).
            h1 = 0.5 * h1 * (1.0 + jnp.tanh(c_gelu * (h1 + 0.044715 * h1 * h1 * h1)))
            h2 = jnp.dot(h1.astype(jnp.bfloat16),
                         w_ref[wb + W_FF2_OFF:wb + W_FF2_OFF + INTERMEDIATE, 0:HIDDEN],
                         preferred_element_type=jnp.float32) + v_ref[vb + 5:vb + 6, 0:HIDDEN]
            x = _ln(x + h2, v_ref[vb + 6:vb + 7, 0:HIDDEN], v_ref[vb + 7:vb + 8, 0:HIDDEN])

        # combined intent|slot classifier -> lane-dense (S, 128) output slab
        out = jnp.dot(x.astype(jnp.bfloat16), w_ref[CLS_W_ROW:CLS_W_ROW + HIDDEN, :],
                      preferred_element_type=jnp.float32) + v_ref[cls_b_row:cls_b_row + 1, :]
        out_ref[0] = out

    return kernel


# --------------------------------- parameter construction -----------------------------------
def init_params(key):
    def nrm(k, shape, scale=0.02):
        return scale * jax.random.normal(k, shape, dtype=jnp.float32)

    keys = iter(jax.random.split(key, 32))
    return {
        "word_emb": nrm(next(keys), (VOCAB, HIDDEN)),
        "pos_emb": nrm(next(keys), (MAX_POS, HIDDEN)),
        "type_emb": nrm(next(keys), (2, HIDDEN)),
        "emb_ln_g": jnp.ones((HIDDEN,), jnp.float32),
        "emb_ln_b": jnp.zeros((HIDDEN,), jnp.float32),
        # stacked per-layer encoder weights; QKV fused along the output dim
        "wqkv": nrm(next(keys), (NUM_LAYERS, HIDDEN, 3 * HIDDEN)),
        "bqkv": jnp.zeros((NUM_LAYERS, 3 * HIDDEN), jnp.float32),
        "wo": nrm(next(keys), (NUM_LAYERS, HIDDEN, HIDDEN)),
        "bo": jnp.zeros((NUM_LAYERS, HIDDEN), jnp.float32),
        "ln1_g": jnp.ones((NUM_LAYERS, HIDDEN), jnp.float32),
        "ln1_b": jnp.zeros((NUM_LAYERS, HIDDEN), jnp.float32),
        "w_ff1": nrm(next(keys), (NUM_LAYERS, HIDDEN, INTERMEDIATE)),
        "b_ff1": jnp.zeros((NUM_LAYERS, INTERMEDIATE), jnp.float32),
        "w_ff2": nrm(next(keys), (NUM_LAYERS, INTERMEDIATE, HIDDEN)),
        "b_ff2": jnp.zeros((NUM_LAYERS, HIDDEN), jnp.float32),
        "ln2_g": jnp.ones((NUM_LAYERS, HIDDEN), jnp.float32),
        "ln2_b": jnp.zeros((NUM_LAYERS, HIDDEN), jnp.float32),
        # classifiers stored as (in, out); PyTorch Linear stores (out, in) and does x @ W^T
        "intent_w": nrm(next(keys), (HIDDEN, INTENT_LABELS)),
        "intent_b": jnp.zeros((INTENT_LABELS,), jnp.float32),
        "slot_w": nrm(next(keys), (HIDDEN, SLOT_LABELS)),
        "slot_b": jnp.zeros((SLOT_LABELS,), jnp.float32),
    }


def _pack_weight_slab(params):
    """All matmul weights in one lane-dense (RW, 128) bf16 slab, 16-row-aligned offsets."""
    w = jnp.zeros((RW, 128), jnp.float32)
    w = w.at[:VOCAB, :HIDDEN].set(params["word_emb"])
    for l in range(NUM_LAYERS):
        r = WORD_ROWS + l * LAYER_W_ROWS
        w = w.at[r + W_QKV_OFF:r + W_QKV_OFF + HIDDEN, :3 * HIDDEN].set(params["wqkv"][l])
        w = w.at[r + W_WO_OFF:r + W_WO_OFF + HIDDEN, :HIDDEN].set(params["wo"][l])
        w = w.at[r + W_FF1_OFF:r + W_FF1_OFF + HIDDEN, :INTERMEDIATE].set(params["w_ff1"][l])
        w = w.at[r + W_FF2_OFF:r + W_FF2_OFF + INTERMEDIATE, :HIDDEN].set(params["w_ff2"][l])
    w = w.at[CLS_W_ROW:CLS_W_ROW + HIDDEN, :INTENT_LABELS].set(params["intent_w"])
    w = w.at[CLS_W_ROW:CLS_W_ROW + HIDDEN,
             INTENT_LABELS:INTENT_LABELS + SLOT_LABELS].set(params["slot_w"])
    return w.astype(jnp.bfloat16)


def _pack_vector_slab(params, S):
    """LN params, biases, pos+type rows and classifier bias in one f32 (RV, 128) slab."""
    pos_row, layer_base, cls_b_row, rv = _vec_slab_layout(S)
    v = jnp.zeros((rv, 128), jnp.float32)
    v = v.at[0, :HIDDEN].set(params["emb_ln_g"])
    v = v.at[1, :HIDDEN].set(params["emb_ln_b"])
    pos_type = params["pos_emb"][:S] + params["type_emb"][0][None, :]   # token_type_ids = 0
    v = v.at[pos_row:pos_row + S, :HIDDEN].set(pos_type)
    for l in range(NUM_LAYERS):
        r = layer_base + l * 8
        v = v.at[r + 0, :3 * HIDDEN].set(params["bqkv"][l])
        v = v.at[r + 1, :HIDDEN].set(params["bo"][l])
        v = v.at[r + 2, :HIDDEN].set(params["ln1_g"][l])
        v = v.at[r + 3, :HIDDEN].set(params["ln1_b"][l])
        v = v.at[r + 4, :INTERMEDIATE].set(params["b_ff1"][l])
        v = v.at[r + 5, :HIDDEN].set(params["b_ff2"][l])
        v = v.at[r + 6, :HIDDEN].set(params["ln2_g"][l])
        v = v.at[r + 7, :HIDDEN].set(params["ln2_b"][l])
    v = v.at[cls_b_row, :INTENT_LABELS].set(params["intent_b"])
    v = v.at[cls_b_row, INTENT_LABELS:INTENT_LABELS + SLOT_LABELS].set(params["slot_b"])
    return v


# --------------------------------------- forward --------------------------------------------
def joint_bert_forward(params, input_ids, attention_mask):
    """Equivalent of JointBERTModel.forward(input_ids, attention_mask, use_pooler=False)."""
    B, S = input_ids.shape

    w_slab = _pack_weight_slab(params)          # one-time parameter prep (constant per model)
    v_slab = _pack_vector_slab(params, S)
    _, _, _, rv = _vec_slab_layout(S)

    ids = input_ids.astype(jnp.int32).reshape(B, S, 1)
    mask = attention_mask.astype(jnp.float32).reshape(B, 1, S)

    logits_pad = pl.pallas_call(
        _make_fused_kernel(S),
        out_shape=jax.ShapeDtypeStruct((B, S, CLS_PAD), jnp.float32),
        grid=(B,),
        in_specs=[
            pl.BlockSpec((1, S, 1), lambda b: (b, 0, 0)),        # token ids (per-batch block)
            pl.BlockSpec((1, 1, S), lambda b: (b, 0, 0)),        # attention mask
            pl.BlockSpec((RW, 128), lambda b: (0, 0)),           # bf16 weight slab (whole)
            pl.BlockSpec((rv, 128), lambda b: (0, 0)),           # f32 vector slab (whole)
        ],
        out_specs=pl.BlockSpec((1, S, CLS_PAD), lambda b: (b, 0, 0)),
        compiler_params=pltpu.CompilerParams(dimension_semantics=("parallel",)),
    )(ids, mask, w_slab, v_slab)

    intent_logits = logits_pad[:, 0, :INTENT_LABELS]              # CLS token (use_pooler=False)
    slot_logits = logits_pad[:, :, INTENT_LABELS:INTENT_LABELS + SLOT_LABELS]
    return intent_logits, slot_logits


# ----------------------------------------- main ---------------------------------------------
if __name__ == "__main__":
    key = jax.random.PRNGKey(0)
    k_param, k_ids = jax.random.split(key)

    B, S = 2, 8
    params = init_params(k_param)
    input_ids = jax.random.randint(k_ids, (B, S), 0, VOCAB, dtype=jnp.int32)
    attention_mask = jnp.ones((B, S), dtype=jnp.float32).at[1, 6:].set(0.0)

    fwd = jax.jit(joint_bert_forward)
    intent_logits, slot_logits = fwd(params, input_ids, attention_mask)
    jax.block_until_ready((intent_logits, slot_logits))

    assert intent_logits.shape == (B, INTENT_LABELS)
    assert slot_logits.shape == (B, S, SLOT_LABELS)
    assert bool(jnp.all(jnp.isfinite(intent_logits))) and bool(jnp.all(jnp.isfinite(slot_logits)))
    print("KERNEL_OK")
</pallas_src>

<mosaic_0001>
module attributes {stable_mosaic.version = 11 : i64} {
  func.func @kernel(%arg0: i32, %arg1: memref<1x8x1xi32, #tpu.memory_space<vmem>>, %arg2: memref<1x1x8xf32, #tpu.memory_space<vmem>>, %arg3: memref<464x128xbf16, #tpu.memory_space<vmem>>, %arg4: memref<40x128xf32, #tpu.memory_space<vmem>>, %arg5: memref<1x8x128xf32, #tpu.memory_space<vmem>>) attributes {dimension_semantics = [#tpu.dimension_semantics<parallel>], iteration_bounds = array<i64: 2>, scalar_prefetch = 0 : i64, scratch_operands = 0 : i64, tpu.core_type = #tpu.core_type<tc>, window_params = [{transform_indices = @transform_0, window_bounds = array<i64: 1, 8, 1>}, {transform_indices = @transform_1, window_bounds = array<i64: 1, 1, 8>}, {pipeline_mode = #tpu.pipeline_mode<synchronous>, transform_indices = @transform_2, window_bounds = array<i64: 464, 128>}, {pipeline_mode = #tpu.pipeline_mode<synchronous>, transform_indices = @transform_3, window_bounds = array<i64: 40, 128>}, {transform_indices = @transform_4, window_bounds = array<i64: 1, 8, 128>}]} {
    %c0 = arith.constant 0 : index
    %c0_0 = arith.constant 0 : index
    %c0_1 = arith.constant 0 : index
    %0 = vector.load %arg1[%c0, %c0_0, %c0_1] : memref<1x8x1xi32, #tpu.memory_space<vmem>>, vector<1x8x1xi32>
    %1 = vector.shape_cast %0 : vector<1x8x1xi32> to vector<8x1xi32>
    %2 = tpu.iota {dimensions = array<i32: 1>} : vector<8x112xi32>
    %3 = vector.broadcast %1 : vector<8x1xi32> to vector<8x112xi32>
    %4 = arith.cmpi eq, %2, %3 : vector<8x112xi32>
    %cst = arith.constant 1.000000e+00 : f32
    %cst_2 = arith.constant 0.000000e+00 : f32
    %5 = vector.broadcast %cst : f32 to vector<8x112xf32>
    %6 = vector.broadcast %cst_2 : f32 to vector<8x112xf32>
    %7 = arith.select %4, %5, %6 : vector<8x112xi1>, vector<8x112xf32>
    %8 = arith.truncf %7 : vector<8x112xf32> to vector<8x112xbf16>
    %c0_3 = arith.constant 0 : index
    %c0_4 = arith.constant 0 : index
    %9 = vector.load %arg3[%c0_3, %c0_4] : memref<464x128xbf16, #tpu.memory_space<vmem>>, vector<112x32xbf16>
    %cst_5 = arith.constant dense<0.000000e+00> : vector<8x32xf32>
    %10 = tpu.matmul %8, %9, %cst_5 {dimension_numbers = #tpu.dot_dimension_numbers<[1], [0], [0], [1], [0, 0, 1, 1], [], []>} : vector<8x112xbf16>, vector<112x32xbf16>, vector<8x32xf32> -> vector<8x32xf32>
    %c8 = arith.constant 8 : index
    %c0_6 = arith.constant 0 : index
    %11 = vector.load %arg4[%c8, %c0_6] : memref<40x128xf32, #tpu.memory_space<vmem>>, vector<8x32xf32>
    %12 = arith.addf %10, %11 : vector<8x32xf32>
    %c0_7 = arith.constant 0 : index
    %c0_8 = arith.constant 0 : index
    %13 = vector.load %arg4[%c0_7, %c0_8] : memref<40x128xf32, #tpu.memory_space<vmem>>, vector<1x32xf32>
    %c1 = arith.constant 1 : index
    %c0_9 = arith.constant 0 : index
    %14 = vector.load %arg4[%c1, %c0_9] : memref<40x128xf32, #tpu.memory_space<vmem>>, vector<1x32xf32>
    %cst_10 = arith.constant dense<0.000000e+00> : vector<8xf32>
    %15 = vector.multi_reduction <add>, %12, %cst_10 [1] : vector<8x32xf32> to vector<8xf32>
    %16 = vector.shape_cast %15 : vector<8xf32> to vector<8x1xf32>
    %cst_11 = arith.constant 3.200000e+01 : f32
    %17 = vector.broadcast %cst_11 : f32 to vector<8x1xf32>
    %18 = arith.divf %16, %17 : vector<8x1xf32>
    %19 = vector.broadcast %18 : vector<8x1xf32> to vector<8x32xf32>
    %20 = arith.subf %12, %19 : vector<8x32xf32>
    %21 = arith.mulf %20, %20 : vector<8x32xf32>
    %cst_12 = arith.constant dense<0.000000e+00> : vector<8xf32>
    %22 = vector.multi_reduction <add>, %21, %cst_12 [1] : vector<8x32xf32> to vector<8xf32>
    %23 = vector.shape_cast %22 : vector<8xf32> to vector<8x1xf32>
    %cst_13 = arith.constant 3.200000e+01 : f32
    %24 = vector.broadcast %cst_13 : f32 to vector<8x1xf32>
    %25 = arith.divf %23, %24 : vector<8x1xf32>
    %cst_14 = arith.constant 9.99999996E-13 : f32
    %26 = vector.broadcast %cst_14 : f32 to vector<8x1xf32>
    %27 = arith.addf %25, %26 : vector<8x1xf32>
    %28 = math.rsqrt %27 : vector<8x1xf32>
    %29 = vector.broadcast %28 : vector<8x1xf32> to vector<8x32xf32>
    %30 = arith.mulf %20, %29 : vector<8x32xf32>
    %31 = vector.broadcast %13 : vector<1x32xf32> to vector<8x32xf32>
    %32 = arith.mulf %30, %31 : vector<8x32xf32>
    %33 = vector.broadcast %14 : vector<1x32xf32> to vector<8x32xf32>
    %34 = arith.addf %32, %33 : vector<8x32xf32>
    %c0_15 = arith.constant 0 : index
    %c0_16 = arith.constant 0 : index
    %c0_17 = arith.constant 0 : index
    %35 = vector.load %arg2[%c0_15, %c0_16, %c0_17] : memref<1x1x8xf32, #tpu.memory_space<vmem>>, vector<1x1x8xf32>
    %36 = vector.shape_cast %35 : vector<1x1x8xf32> to vector<1x8xf32>
    %cst_18 = arith.constant 1.000000e+00 : f32
    %37 = vector.broadcast %cst_18 : f32 to vector<1x8xf32>
    %38 = arith.subf %37, %36 : vector<1x8xf32>
    %cst_19 = arith.constant -1.000000e+04 : f32
    %39 = vector.broadcast %cst_19 : f32 to vector<1x8xf32>
    %40 = arith.mulf %38, %39 : vector<1x8xf32>
    %41 = arith.truncf %34 : vector<8x32xf32> to vector<8x32xbf16>
    %c112 = arith.constant 112 : index
    %c0_20 = arith.constant 0 : index
    %42 = vector.load %arg3[%c112, %c0_20] : memref<464x128xbf16, #tpu.memory_space<vmem>>, vector<32x128xbf16>
    %cst_21 = arith.constant dense<0.000000e+00> : vector<8x128xf32>
    %43 = tpu.matmul %41, %42, %cst_21 {dimension_numbers = #tpu.dot_dimension_numbers<[1], [0], [0], [1], [0, 0, 1, 1], [], []>} : vector<8x32xbf16>, vector<32x128xbf16>, vector<8x128xf32> -> vector<8x128xf32>
    %c16 = arith.constant 16 : index
    %c0_22 = arith.constant 0 : index
    %44 = vector.load %arg4[%c16, %c0_22] : memref<40x128xf32, #tpu.memory_space<vmem>>, vector<1x128xf32>
    %45 = vector.broadcast %44 : vector<1x128xf32> to vector<8x128xf32>
    %46 = arith.addf %43, %45 : vector<8x128xf32>
    %47 = vector.extract_strided_slice %46 {offsets = [0, 0], sizes = [8, 32], strides = [1, 1]} : vector<8x128xf32> to vector<8x32xf32>
    %48 = arith.truncf %47 : vector<8x32xf32> to vector<8x32xbf16>
    %49 = vector.extract_strided_slice %46 {offsets = [0, 32], sizes = [8, 32], strides = [1, 1]} : vector<8x128xf32> to vector<8x32xf32>
    %50 = arith.truncf %49 : vector<8x32xf32> to vector<8x32xbf16>
    %51 = vector.extract_strided_slice %46 {offsets = [0, 64], sizes = [8, 32], strides = [1, 1]} : vector<8x128xf32> to vector<8x32xf32>
    %52 = arith.truncf %51 : vector<8x32xf32> to vector<8x32xbf16>
    %53 = vector.extract_strided_slice %48 {offsets = [0, 0], sizes = [8, 16], strides = [1, 1]} : vector<8x32xbf16> to vector<8x16xbf16>
    %54 = vector.extract_strided_slice %50 {offsets = [0, 0], sizes = [8, 16], strides = [1, 1]} : vector<8x32xbf16> to vector<8x16xbf16>
    %55 = vector.extract_strided_slice %52 {offsets = [0, 0], sizes = [8, 16], strides = [1, 1]} : vector<8x32xbf16> to vector<8x16xbf16>
    %cst_23 = arith.constant dense<0.000000e+00> : vector<8x8xf32>
    %56 = tpu.matmul %53, %54, %cst_23 {dimension_numbers = #tpu.dot_dimension_numbers<[1], [1], [0], [0], [0, 0, 1, 0], [], []>} : vector<8x16xbf16>, vector<8x16xbf16>, vector<8x8xf32> -> vector<8x8xf32>
    %cst_24 = arith.constant 2.500000e-01 : f32
    %57 = vector.broadcast %cst_24 : f32 to vector<8x8xf32>
    %58 = arith.mulf %56, %57 : vector<8x8xf32>
    %59 = vector.broadcast %40 : vector<1x8xf32> to vector<8x8xf32>
    %60 = arith.addf %58, %59 : vector<8x8xf32>
    %cst_25 = arith.constant dense<0xFF800000> : vector<8xf32>
    %61 = vector.multi_reduction <maximumf>, %60, %cst_25 [1] : vector<8x8xf32> to vector<8xf32>
    %62 = vector.shape_cast %61 : vector<8xf32> to vector<8x1xf32>
    %63 = vector.broadcast %62 : vector<8x1xf32> to vector<8x8xf32>
    %64 = arith.subf %60, %63 : vector<8x8xf32>
    %65 = math.exp %64 : vector<8x8xf32>
    %cst_26 = arith.constant dense<0.000000e+00> : vector<8xf32>
    %66 = vector.multi_reduction <add>, %65, %cst_26 [1] : vector<8x8xf32> to vector<8xf32>
    %67 = vector.shape_cast %66 : vector<8xf32> to vector<8x1xf32>
    %68 = tpu.reciprocal %67 {approx = true} : vector<8x1xf32> -> vector<8x1xf32>
    %69 = vector.broadcast %68 : vector<8x1xf32> to vector<8x8xf32>
    %70 = arith.mulf %65, %69 : vector<8x8xf32>
    %71 = arith.truncf %70 : vector<8x8xf32> to vector<8x8xbf16>
    %cst_27 = arith.constant dense<0.000000e+00> : vector<8x16xf32>
    %72 = tpu.matmul %71, %55, %cst_27 {dimension_numbers = #tpu.dot_dimension_numbers<[1], [0], [0], [1], [0, 0, 1, 1], [], []>} : vector<8x8xbf16>, vector<8x16xbf16>, vector<8x16xf32> -> vector<8x16xf32>
    %73 = vector.extract_strided_slice %48 {offsets = [0, 16], sizes = [8, 16], strides = [1, 1]} : vector<8x32xbf16> to vector<8x16xbf16>
    %74 = vector.extract_strided_slice %50 {offsets = [0, 16], sizes = [8, 16], strides = [1, 1]} : vector<8x32xbf16> to vector<8x16xbf16>
    %75 = vector.extract_strided_slice %52 {offsets = [0, 16], sizes = [8, 16], strides = [1, 1]} : vector<8x32xbf16> to vector<8x16xbf16>
    %cst_28 = arith.constant dense<0.000000e+00> : vector<8x8xf32>
    %76 = tpu.matmul %73, %74, %cst_28 {dimension_numbers = #tpu.dot_dimension_numbers<[1], [1], [0], [0], [0, 0, 1, 0], [], []>} : vector<8x16xbf16>, vector<8x16xbf16>, vector<8x8xf32> -> vector<8x8xf32>
    %cst_29 = arith.constant 2.500000e-01 : f32
    %77 = vector.broadcast %cst_29 : f32 to vector<8x8xf32>
    %78 = arith.mulf %76, %77 : vector<8x8xf32>
    %79 = vector.broadcast %40 : vector<1x8xf32> to vector<8x8xf32>
    %80 = arith.addf %78, %79 : vector<8x8xf32>
    %cst_30 = arith.constant dense<0xFF800000> : vector<8xf32>
    %81 = vector.multi_reduction <maximumf>, %80, %cst_30 [1] : vector<8x8xf32> to vector<8xf32>
    %82 = vector.shape_cast %81 : vector<8xf32> to vector<8x1xf32>
    %83 = vector.broadcast %82 : vector<8x1xf32> to vector<8x8xf32>
    %84 = arith.subf %80, %83 : vector<8x8xf32>
    %85 = math.exp %84 : vector<8x8xf32>
    %cst_31 = arith.constant dense<0.000000e+00> : vector<8xf32>
    %86 = vector.multi_reduction <add>, %85, %cst_31 [1] : vector<8x8xf32> to vector<8xf32>
    %87 = vector.shape_cast %86 : vector<8xf32> to vector<8x1xf32>
    %88 = tpu.reciprocal %87 {approx = true} : vector<8x1xf32> -> vector<8x1xf32>
    %89 = vector.broadcast %88 : vector<8x1xf32> to vector<8x8xf32>
    %90 = arith.mulf %85, %89 : vector<8x8xf32>
    %91 = arith.truncf %90 : vector<8x8xf32> to vector<8x8xbf16>
    %cst_32 = arith.constant dense<0.000000e+00> : vector<8x16xf32>
    %92 = tpu.matmul %91, %75, %cst_32 {dimension_numbers = #tpu.dot_dimension_numbers<[1], [0], [0], [1], [0, 0, 1, 1], [], []>} : vector<8x8xbf16>, vector<8x16xbf16>, vector<8x16xf32> -> vector<8x16xf32>
    %93 = tpu.concatenate %72, %92 in 1 : vector<8x16xf32>, vector<8x16xf32> -> vector<8x32xf32>
    %94 = arith.truncf %93 : vector<8x32xf32> to vector<8x32xbf16>
    %c144 = arith.constant 144 : index
    %c0_33 = arith.constant 0 : index
    %95 = vector.load %arg3[%c144, %c0_33] : memref<464x128xbf16, #tpu.memory_space<vmem>>, vector<32x32xbf16>
    %cst_34 = arith.constant dense<0.000000e+00> : vector<8x32xf32>
    %96 = tpu.matmul %94, %95, %cst_34 {dimension_numbers = #tpu.dot_dimension_numbers<[1], [0], [0], [1], [0, 0, 1, 1], [], []>} : vector<8x32xbf16>, vector<32x32xbf16>, vector<8x32xf32> -> vector<8x32xf32>
    %c17 = arith.constant 17 : index
    %c0_35 = arith.constant 0 : index
    %97 = vector.load %arg4[%c17, %c0_35] : memref<40x128xf32, #tpu.memory_space<vmem>>, vector<1x32xf32>
    %98 = vector.broadcast %97 : vector<1x32xf32> to vector<8x32xf32>
    %99 = arith.addf %96, %98 : vector<8x32xf32>
    %100 = arith.addf %34, %99 : vector<8x32xf32>
    %c18 = arith.constant 18 : index
    %c0_36 = arith.constant 0 : index
    %101 = vector.load %arg4[%c18, %c0_36] : memref<40x128xf32, #tpu.memory_space<vmem>>, vector<1x32xf32>
    %c19 = arith.constant 19 : index
    %c0_37 = arith.constant 0 : index
    %102 = vector.load %arg4[%c19, %c0_37] : memref<40x128xf32, #tpu.memory_space<vmem>>, vector<1x32xf32>
    %cst_38 = arith.constant dense<0.000000e+00> : vector<8xf32>
    %103 = vector.multi_reduction <add>, %100, %cst_38 [1] : vector<8x32xf32> to vector<8xf32>
    %104 = vector.shape_cast %103 : vector<8xf32> to vector<8x1xf32>
    %cst_39 = arith.constant 3.200000e+01 : f32
    %105 = vector.broadcast %cst_39 : f32 to vector<8x1xf32>
    %106 = arith.divf %104, %105 : vector<8x1xf32>
    %107 = vector.broadcast %106 : vector<8x1xf32> to vector<8x32xf32>
    %108 = arith.subf %100, %107 : vector<8x32xf32>
    %109 = arith.mulf %108, %108 : vector<8x32xf32>
    %cst_40 = arith.constant dense<0.000000e+00> : vector<8xf32>
    %110 = vector.multi_reduction <add>, %109, %cst_40 [1] : vector<8x32xf32> to vector<8xf32>
    %111 = vector.shape_cast %110 : vector<8xf32> to vector<8x1xf32>
    %cst_41 = arith.constant 3.200000e+01 : f32
    %112 = vector.broadcast %cst_41 : f32 to vector<8x1xf32>
    %113 = arith.divf %111, %112 : vector<8x1xf32>
    %cst_42 = arith.constant 9.99999996E-13 : f32
    %114 = vector.broadcast %cst_42 : f32 to vector<8x1xf32>
    %115 = arith.addf %113, %114 : vector<8x1xf32>
    %116 = math.rsqrt %115 : vector<8x1xf32>
    %117 = vector.broadcast %116 : vector<8x1xf32> to vector<8x32xf32>
    %118 = arith.mulf %108, %117 : vector<8x32xf32>
    %119 = vector.broadcast %101 : vector<1x32xf32> to vector<8x32xf32>
    %120 = arith.mulf %118, %119 : vector<8x32xf32>
    %121 = vector.broadcast %102 : vector<1x32xf32> to vector<8x32xf32>
    %122 = arith.addf %120, %121 : vector<8x32xf32>
    %123 = arith.truncf %122 : vector<8x32xf32> to vector<8x32xbf16>
    %c176 = arith.constant 176 : index
    %c0_43 = arith.constant 0 : index
    %124 = vector.load %arg3[%c176, %c0_43] : memref<464x128xbf16, #tpu.memory_space<vmem>>, vector<32x64xbf16>
    %cst_44 = arith.constant dense<0.000000e+00> : vector<8x64xf32>
    %125 = tpu.matmul %123, %124, %cst_44 {dimension_numbers = #tpu.dot_dimension_numbers<[1], [0], [0], [1], [0, 0, 1, 1], [], []>} : vector<8x32xbf16>, vector<32x64xbf16>, vector<8x64xf32> -> vector<8x64xf32>
    %c20 = arith.constant 20 : index
    %c0_45 = arith.constant 0 : index
    %126 = vector.load %arg4[%c20, %c0_45] : memref<40x128xf32, #tpu.memory_space<vmem>>, vector<1x64xf32>
    %127 = vector.broadcast %126 : vector<1x64xf32> to vector<8x64xf32>
    %128 = arith.addf %125, %127 : vector<8x64xf32>
    %cst_46 = arith.constant 5.000000e-01 : f32
    %129 = vector.broadcast %cst_46 : f32 to vector<8x64xf32>
    %130 = arith.mulf %129, %128 : vector<8x64xf32>
    %cst_47 = arith.constant 4.471500e-02 : f32
    %131 = vector.broadcast %cst_47 : f32 to vector<8x64xf32>
    %132 = arith.mulf %131, %128 : vector<8x64xf32>
    %133 = arith.mulf %132, %128 : vector<8x64xf32>
    %134 = arith.mulf %133, %128 : vector<8x64xf32>
    %135 = arith.addf %128, %134 : vector<8x64xf32>
    %cst_48 = arith.constant 0.797884583 : f32
    %136 = vector.broadcast %cst_48 : f32 to vector<8x64xf32>
    %137 = arith.mulf %136, %135 : vector<8x64xf32>
    %138 = math.tanh %137 : vector<8x64xf32>
    %cst_49 = arith.constant 1.000000e+00 : f32
    %139 = vector.broadcast %cst_49 : f32 to vector<8x64xf32>
    %140 = arith.addf %139, %138 : vector<8x64xf32>
    %141 = arith.mulf %130, %140 : vector<8x64xf32>
    %142 = arith.truncf %141 : vector<8x64xf32> to vector<8x64xbf16>
    %c208 = arith.constant 208 : index
    %c0_50 = arith.constant 0 : index
    %143 = vector.load %arg3[%c208, %c0_50] : memref<464x128xbf16, #tpu.memory_space<vmem>>, vector<64x32xbf16>
    %cst_51 = arith.constant dense<0.000000e+00> : vector<8x32xf32>
    %144 = tpu.matmul %142, %143, %cst_51 {dimension_numbers = #tpu.dot_dimension_numbers<[1], [0], [0], [1], [0, 0, 1, 1], [], []>} : vector<8x64xbf16>, vector<64x32xbf16>, vector<8x32xf32> -> vector<8x32xf32>
    %c21 = arith.constant 21 : index
    %c0_52 = arith.constant 0 : index
    %145 = vector.load %arg4[%c21, %c0_52] : memref<40x128xf32, #tpu.memory_space<vmem>>, vector<1x32xf32>
    %146 = vector.broadcast %145 : vector<1x32xf32> to vector<8x32xf32>
    %147 = arith.addf %144, %146 : vector<8x32xf32>
    %148 = arith.addf %122, %147 : vector<8x32xf32>
    %c22 = arith.constant 22 : index
    %c0_53 = arith.constant 0 : index
    %149 = vector.load %arg4[%c22, %c0_53] : memref<40x128xf32, #tpu.memory_space<vmem>>, vector<1x32xf32>
    %c23 = arith.constant 23 : index
    %c0_54 = arith.constant 0 : index
    %150 = vector.load %arg4[%c23, %c0_54] : memref<40x128xf32, #tpu.memory_space<vmem>>, vector<1x32xf32>
    %cst_55 = arith.constant dense<0.000000e+00> : vector<8xf32>
    %151 = vector.multi_reduction <add>, %148, %cst_55 [1] : vector<8x32xf32> to vector<8xf32>
    %152 = vector.shape_cast %151 : vector<8xf32> to vector<8x1xf32>
    %cst_56 = arith.constant 3.200000e+01 : f32
    %153 = vector.broadcast %cst_56 : f32 to vector<8x1xf32>
    %154 = arith.divf %152, %153 : vector<8x1xf32>
    %155 = vector.broadcast %154 : vector<8x1xf32> to vector<8x32xf32>
    %156 = arith.subf %148, %155 : vector<8x32xf32>
    %157 = arith.mulf %156, %156 : vector<8x32xf32>
    %cst_57 = arith.constant dense<0.000000e+00> : vector<8xf32>
    %158 = vector.multi_reduction <add>, %157, %cst_57 [1] : vector<8x32xf32> to vector<8xf32>
    %159 = vector.shape_cast %158 : vector<8xf32> to vector<8x1xf32>
    %cst_58 = arith.constant 3.200000e+01 : f32
    %160 = vector.broadcast %cst_58 : f32 to vector<8x1xf32>
    %161 = arith.divf %159, %160 : vector<8x1xf32>
    %cst_59 = arith.constant 9.99999996E-13 : f32
    %162 = vector.broadcast %cst_59 : f32 to vector<8x1xf32>
    %163 = arith.addf %161, %162 : vector<8x1xf32>
    %164 = math.rsqrt %163 : vector<8x1xf32>
    %165 = vector.broadcast %164 : vector<8x1xf32> to vector<8x32xf32>
    %166 = arith.mulf %156, %165 : vector<8x32xf32>
    %167 = vector.broadcast %149 : vector<1x32xf32> to vector<8x32xf32>
    %168 = arith.mulf %166, %167 : vector<8x32xf32>
    %169 = vector.broadcast %150 : vector<1x32xf32> to vector<8x32xf32>
    %170 = arith.addf %168, %169 : vector<8x32xf32>
    %171 = arith.truncf %170 : vector<8x32xf32> to vector<8x32xbf16>
    %c272 = arith.constant 272 : index
    %c0_60 = arith.constant 0 : index
    %172 = vector.load %arg3[%c272, %c0_60] : memref<464x128xbf16, #tpu.memory_space<vmem>>, vector<32x128xbf16>
    %cst_61 = arith.constant dense<0.000000e+00> : vector<8x128xf32>
    %173 = tpu.matmul %171, %172, %cst_61 {dimension_numbers = #tpu.dot_dimension_numbers<[1], [0], [0], [1], [0, 0, 1, 1], [], []>} : vector<8x32xbf16>, vector<32x128xbf16>, vector<8x128xf32> -> vector<8x128xf32>
    %c24 = arith.constant 24 : index
    %c0_62 = arith.constant 0 : index
    %174 = vector.load %arg4[%c24, %c0_62] : memref<40x128xf32, #tpu.memory_space<vmem>>, vector<1x128xf32>
    %175 = vector.broadcast %174 : vector<1x128xf32> to vector<8x128xf32>
    %176 = arith.addf %173, %175 : vector<8x128xf32>
    %177 = vector.extract_strided_slice %176 {offsets = [0, 0], sizes = [8, 32], strides = [1, 1]} : vector<8x128xf32> to vector<8x32xf32>
    %178 = arith.truncf %177 : vector<8x32xf32> to vector<8x32xbf16>
    %179 = vector.extract_strided_slice %176 {offsets = [0, 32], sizes = [8, 32], strides = [1, 1]} : vector<8x128xf32> to vector<8x32xf32>
    %180 = arith.truncf %179 : vector<8x32xf32> to vector<8x32xbf16>
    %181 = vector.extract_strided_slice %176 {offsets = [0, 64], sizes = [8, 32], strides = [1, 1]} : vector<8x128xf32> to vector<8x32xf32>
    %182 = arith.truncf %181 : vector<8x32xf32> to vector<8x32xbf16>
    %183 = vector.extract_strided_slice %178 {offsets = [0, 0], sizes = [8, 16], strides = [1, 1]} : vector<8x32xbf16> to vector<8x16xbf16>
    %184 = vector.extract_strided_slice %180 {offsets = [0, 0], sizes = [8, 16], strides = [1, 1]} : vector<8x32xbf16> to vector<8x16xbf16>
    %185 = vector.extract_strided_slice %182 {offsets = [0, 0], sizes = [8, 16], strides = [1, 1]} : vector<8x32xbf16> to vector<8x16xbf16>
    %cst_63 = arith.constant dense<0.000000e+00> : vector<8x8xf32>
    %186 = tpu.matmul %183, %184, %cst_63 {dimension_numbers = #tpu.dot_dimension_numbers<[1], [1], [0], [0], [0, 0, 1, 0], [], []>} : vector<8x16xbf16>, vector<8x16xbf16>, vector<8x8xf32> -> vector<8x8xf32>
    %cst_64 = arith.constant 2.500000e-01 : f32
    %187 = vector.broadcast %cst_64 : f32 to vector<8x8xf32>
    %188 = arith.mulf %186, %187 : vector<8x8xf32>
    %189 = vector.broadcast %40 : vector<1x8xf32> to vector<8x8xf32>
    %190 = arith.addf %188, %189 : vector<8x8xf32>
    %cst_65 = arith.constant dense<0xFF800000> : vector<8xf32>
    %191 = vector.multi_reduction <maximumf>, %190, %cst_65 [1] : vector<8x8xf32> to vector<8xf32>
    %192 = vector.shape_cast %191 : vector<8xf32> to vector<8x1xf32>
    %193 = vector.broadcast %192 : vector<8x1xf32> to vector<8x8xf32>
    %194 = arith.subf %190, %193 : vector<8x8xf32>
    %195 = math.exp %194 : vector<8x8xf32>
    %cst_66 = arith.constant dense<0.000000e+00> : vector<8xf32>
    %196 = vector.multi_reduction <add>, %195, %cst_66 [1] : vector<8x8xf32> to vector<8xf32>
    %197 = vector.shape_cast %196 : vector<8xf32> to vector<8x1xf32>
    %198 = tpu.reciprocal %197 {approx = true} : vector<8x1xf32> -> vector<8x1xf32>
    %199 = vector.broadcast %198 : vector<8x1xf32> to vector<8x8xf32>
    %200 = arith.mulf %195, %199 : vector<8x8xf32>
    %201 = arith.truncf %200 : vector<8x8xf32> to vector<8x8xbf16>
    %cst_67 = arith.constant dense<0.000000e+00> : vector<8x16xf32>
    %202 = tpu.matmul %201, %185, %cst_67 {dimension_numbers = #tpu.dot_dimension_numbers<[1], [0], [0], [1], [0, 0, 1, 1], [], []>} : vector<8x8xbf16>, vector<8x16xbf16>, vector<8x16xf32> -> vector<8x16xf32>
    %203 = vector.extract_strided_slice %178 {offsets = [0, 16], sizes = [8, 16], strides = [1, 1]} : vector<8x32xbf16> to vector<8x16xbf16>
    %204 = vector.extract_strided_slice %180 {offsets = [0, 16], sizes = [8, 16], strides = [1, 1]} : vector<8x32xbf16> to vector<8x16xbf16>
    %205 = vector.extract_strided_slice %182 {offsets = [0, 16], sizes = [8, 16], strides = [1, 1]} : vector<8x32xbf16> to vector<8x16xbf16>
    %cst_68 = arith.constant dense<0.000000e+00> : vector<8x8xf32>
    %206 = tpu.matmul %203, %204, %cst_68 {dimension_numbers = #tpu.dot_dimension_numbers<[1], [1], [0], [0], [0, 0, 1, 0], [], []>} : vector<8x16xbf16>, vector<8x16xbf16>, vector<8x8xf32> -> vector<8x8xf32>
    %cst_69 = arith.constant 2.500000e-01 : f32
    %207 = vector.broadcast %cst_69 : f32 to vector<8x8xf32>
    %208 = arith.mulf %206, %207 : vector<8x8xf32>
    %209 = vector.broadcast %40 : vector<1x8xf32> to vector<8x8xf32>
    %210 = arith.addf %208, %209 : vector<8x8xf32>
    %cst_70 = arith.constant dense<0xFF800000> : vector<8xf32>
    %211 = vector.multi_reduction <maximumf>, %210, %cst_70 [1] : vector<8x8xf32> to vector<8xf32>
    %212 = vector.shape_cast %211 : vector<8xf32> to vector<8x1xf32>
    %213 = vector.broadcast %212 : vector<8x1xf32> to vector<8x8xf32>
    %214 = arith.subf %210, %213 : vector<8x8xf32>
    %215 = math.exp %214 : vector<8x8xf32>
    %cst_71 = arith.constant dense<0.000000e+00> : vector<8xf32>
    %216 = vector.multi_reduction <add>, %215, %cst_71 [1] : vector<8x8xf32> to vector<8xf32>
    %217 = vector.shape_cast %216 : vector<8xf32> to vector<8x1xf32>
    %218 = tpu.reciprocal %217 {approx = true} : vector<8x1xf32> -> vector<8x1xf32>
    %219 = vector.broadcast %218 : vector<8x1xf32> to vector<8x8xf32>
    %220 = arith.mulf %215, %219 : vector<8x8xf32>
    %221 = arith.truncf %220 : vector<8x8xf32> to vector<8x8xbf16>
    %cst_72 = arith.constant dense<0.000000e+00> : vector<8x16xf32>
    %222 = tpu.matmul %221, %205, %cst_72 {dimension_numbers = #tpu.dot_dimension_numbers<[1], [0], [0], [1], [0, 0, 1, 1], [], []>} : vector<8x8xbf16>, vector<8x16xbf16>, vector<8x16xf32> -> vector<8x16xf32>
    %223 = tpu.concatenate %202, %222 in 1 : vector<8x16xf32>, vector<8x16xf32> -> vector<8x32xf32>
    %224 = arith.truncf %223 : vector<8x32xf32> to vector<8x32xbf16>
    %c304 = arith.constant 304 : index
    %c0_73 = arith.constant 0 : index
    %225 = vector.load %arg3[%c304, %c0_73] : memref<464x128xbf16, #tpu.memory_space<vmem>>, vector<32x32xbf16>
    %cst_74 = arith.constant dense<0.000000e+00> : vector<8x32xf32>
    %226 = tpu.matmul %224, %225, %cst_74 {dimension_numbers = #tpu.dot_dimension_numbers<[1], [0], [0], [1], [0, 0, 1, 1], [], []>} : vector<8x32xbf16>, vector<32x32xbf16>, vector<8x32xf32> -> vector<8x32xf32>
    %c25 = arith.constant 25 : index
    %c0_75 = arith.constant 0 : index
    %227 = vector.load %arg4[%c25, %c0_75] : memref<40x128xf32, #tpu.memory_space<vmem>>, vector<1x32xf32>
    %228 = vector.broadcast %227 : vector<1x32xf32> to vector<8x32xf32>
    %229 = arith.addf %226, %228 : vector<8x32xf32>
    %230 = arith.addf %170, %229 : vector<8x32xf32>
    %c26 = arith.constant 26 : index
    %c0_76 = arith.constant 0 : index
    %231 = vector.load %arg4[%c26, %c0_76] : memref<40x128xf32, #tpu.memory_space<vmem>>, vector<1x32xf32>
    %c27 = arith.constant 27 : index
    %c0_77 = arith.constant 0 : index
    %232 = vector.load %arg4[%c27, %c0_77] : memref<40x128xf32, #tpu.memory_space<vmem>>, vector<1x32xf32>
    %cst_78 = arith.constant dense<0.000000e+00> : vector<8xf32>
    %233 = vector.multi_reduction <add>, %230, %cst_78 [1] : vector<8x32xf32> to vector<8xf32>
    %234 = vector.shape_cast %233 : vector<8xf32> to vector<8x1xf32>
    %cst_79 = arith.constant 3.200000e+01 : f32
    %235 = vector.broadcast %cst_79 : f32 to vector<8x1xf32>
    %236 = arith.divf %234, %235 : vector<8x1xf32>
    %237 = vector.broadcast %236 : vector<8x1xf32> to vector<8x32xf32>
    %238 = arith.subf %230, %237 : vector<8x32xf32>
    %239 = arith.mulf %238, %238 : vector<8x32xf32>
    %cst_80 = arith.constant dense<0.000000e+00> : vector<8xf32>
    %240 = vector.multi_reduction <add>, %239, %cst_80 [1] : vector<8x32xf32> to vector<8xf32>
    %241 = vector.shape_cast %240 : vector<8xf32> to vector<8x1xf32>
    %cst_81 = arith.constant 3.200000e+01 : f32
    %242 = vector.broadcast %cst_81 : f32 to vector<8x1xf32>
    %243 = arith.divf %241, %242 : vector<8x1xf32>
    %cst_82 = arith.constant 9.99999996E-13 : f32
    %244 = vector.broadcast %cst_82 : f32 to vector<8x1xf32>
    %245 = arith.addf %243, %244 : vector<8x1xf32>
    %246 = math.rsqrt %245 : vector<8x1xf32>
    %247 = vector.broadcast %246 : vector<8x1xf32> to vector<8x32xf32>
    %248 = arith.mulf %238, %247 : vector<8x32xf32>
    %249 = vector.broadcast %231 : vector<1x32xf32> to vector<8x32xf32>
    %250 = arith.mulf %248, %249 : vector<8x32xf32>
    %251 = vector.broadcast %232 : vector<1x32xf32> to vector<8x32xf32>
    %252 = arith.addf %250, %251 : vector<8x32xf32>
    %253 = arith.truncf %252 : vector<8x32xf32> to vector<8x32xbf16>
    %c336 = arith.constant 336 : index
    %c0_83 = arith.constant 0 : index
    %254 = vector.load %arg3[%c336, %c0_83] : memref<464x128xbf16, #tpu.memory_space<vmem>>, vector<32x64xbf16>
    %cst_84 = arith.constant dense<0.000000e+00> : vector<8x64xf32>
    %255 = tpu.matmul %253, %254, %cst_84 {dimension_numbers = #tpu.dot_dimension_numbers<[1], [0], [0], [1], [0, 0, 1, 1], [], []>} : vector<8x32xbf16>, vector<32x64xbf16>, vector<8x64xf32> -> vector<8x64xf32>
    %c28 = arith.constant 28 : index
    %c0_85 = arith.constant 0 : index
    %256 = vector.load %arg4[%c28, %c0_85] : memref<40x128xf32, #tpu.memory_space<vmem>>, vector<1x64xf32>
    %257 = vector.broadcast %256 : vector<1x64xf32> to vector<8x64xf32>
    %258 = arith.addf %255, %257 : vector<8x64xf32>
    %cst_86 = arith.constant 5.000000e-01 : f32
    %259 = vector.broadcast %cst_86 : f32 to vector<8x64xf32>
    %260 = arith.mulf %259, %258 : vector<8x64xf32>
    %cst_87 = arith.constant 4.471500e-02 : f32
    %261 = vector.broadcast %cst_87 : f32 to vector<8x64xf32>
    %262 = arith.mulf %261, %258 : vector<8x64xf32>
    %263 = arith.mulf %262, %258 : vector<8x64xf32>
    %264 = arith.mulf %263, %258 : vector<8x64xf32>
    %265 = arith.addf %258, %264 : vector<8x64xf32>
    %cst_88 = arith.constant 0.797884583 : f32
    %266 = vector.broadcast %cst_88 : f32 to vector<8x64xf32>
    %267 = arith.mulf %266, %265 : vector<8x64xf32>
    %268 = math.tanh %267 : vector<8x64xf32>
    %cst_89 = arith.constant 1.000000e+00 : f32
    %269 = vector.broadcast %cst_89 : f32 to vector<8x64xf32>
    %270 = arith.addf %269, %268 : vector<8x64xf32>
    %271 = arith.mulf %260, %270 : vector<8x64xf32>
    %272 = arith.truncf %271 : vector<8x64xf32> to vector<8x64xbf16>
    %c368 = arith.constant 368 : index
    %c0_90 = arith.constant 0 : index
    %273 = vector.load %arg3[%c368, %c0_90] : memref<464x128xbf16, #tpu.memory_space<vmem>>, vector<64x32xbf16>
    %cst_91 = arith.constant dense<0.000000e+00> : vector<8x32xf32>
    %274 = tpu.matmul %272, %273, %cst_91 {dimension_numbers = #tpu.dot_dimension_numbers<[1], [0], [0], [1], [0, 0, 1, 1], [], []>} : vector<8x64xbf16>, vector<64x32xbf16>, vector<8x32xf32> -> vector<8x32xf32>
    %c29 = arith.constant 29 : index
    %c0_92 = arith.constant 0 : index
    %275 = vector.load %arg4[%c29, %c0_92] : memref<40x128xf32, #tpu.memory_space<vmem>>, vector<1x32xf32>
    %276 = vector.broadcast %275 : vector<1x32xf32> to vector<8x32xf32>
    %277 = arith.addf %274, %276 : vector<8x32xf32>
    %278 = arith.addf %252, %277 : vector<8x32xf32>
    %c30 = arith.constant 30 : index
    %c0_93 = arith.constant 0 : index
    %279 = vector.load %arg4[%c30, %c0_93] : memref<40x128xf32, #tpu.memory_space<vmem>>, vector<1x32xf32>
    %c31 = arith.constant 31 : index
    %c0_94 = arith.constant 0 : index
    %280 = vector.load %arg4[%c31, %c0_94] : memref<40x128xf32, #tpu.memory_space<vmem>>, vector<1x32xf32>
    %cst_95 = arith.constant dense<0.000000e+00> : vector<8xf32>
    %281 = vector.multi_reduction <add>, %278, %cst_95 [1] : vector<8x32xf32> to vector<8xf32>
    %282 = vector.shape_cast %281 : vector<8xf32> to vector<8x1xf32>
    %cst_96 = arith.constant 3.200000e+01 : f32
    %283 = vector.broadcast %cst_96 : f32 to vector<8x1xf32>
    %284 = arith.divf %282, %283 : vector<8x1xf32>
    %285 = vector.broadcast %284 : vector<8x1xf32> to vector<8x32xf32>
    %286 = arith.subf %278, %285 : vector<8x32xf32>
    %287 = arith.mulf %286, %286 : vector<8x32xf32>
    %cst_97 = arith.constant dense<0.000000e+00> : vector<8xf32>
    %288 = vector.multi_reduction <add>, %287, %cst_97 [1] : vector<8x32xf32> to vector<8xf32>
    %289 = vector.shape_cast %288 : vector<8xf32> to vector<8x1xf32>
    %cst_98 = arith.constant 3.200000e+01 : f32
    %290 = vector.broadcast %cst_98 : f32 to vector<8x1xf32>
    %291 = arith.divf %289, %290 : vector<8x1xf32>
    %cst_99 = arith.constant 9.99999996E-13 : f32
    %292 = vector.broadcast %cst_99 : f32 to vector<8x1xf32>
    %293 = arith.addf %291, %292 : vector<8x1xf32>
    %294 = math.rsqrt %293 : vector<8x1xf32>
    %295 = vector.broadcast %294 : vector<8x1xf32> to vector<8x32xf32>
    %296 = arith.mulf %286, %295 : vector<8x32xf32>
    %297 = vector.broadcast %279 : vector<1x32xf32> to vector<8x32xf32>
    %298 = arith.mulf %296, %297 : vector<8x32xf32>
    %299 = vector.broadcast %280 : vector<1x32xf32> to vector<8x32xf32>
    %300 = arith.addf %298, %299 : vector<8x32xf32>
    %301 = arith.truncf %300 : vector<8x32xf32> to vector<8x32xbf16>
    %c432 = arith.constant 432 : index
    %c0_100 = arith.constant 0 : index
    %302 = vector.load %arg3[%c432, %c0_100] : memref<464x128xbf16, #tpu.memory_space<vmem>>, vector<32x128xbf16>
    %cst_101 = arith.constant dense<0.000000e+00> : vector<8x128xf32>
    %303 = tpu.matmul %301, %302, %cst_101 {dimension_numbers = #tpu.dot_dimension_numbers<[1], [0], [0], [1], [0, 0, 1, 1], [], []>} : vector<8x32xbf16>, vector<32x128xbf16>, vector<8x128xf32> -> vector<8x128xf32>
    %c32 = arith.constant 32 : index
    %c0_102 = arith.constant 0 : index
    %304 = vector.load %arg4[%c32, %c0_102] : memref<40x128xf32, #tpu.memory_space<vmem>>, vector<1x128xf32>
    %305 = vector.broadcast %304 : vector<1x128xf32> to vector<8x128xf32>
    %306 = arith.addf %303, %305 : vector<8x128xf32>
    %c0_103 = arith.constant 0 : index
    %c0_104 = arith.constant 0 : index
    %c0_105 = arith.constant 0 : index
    %307 = vector.load %arg5[%c0_103, %c0_104, %c0_105] : memref<1x8x128xf32, #tpu.memory_space<vmem>>, vector<1x8x128xf32>
    %308 = vector.shape_cast %307 : vector<1x8x128xf32> to vector<8x128xf32>
    %309 = vector.shape_cast %306 : vector<8x128xf32> to vector<1x8x128xf32>
    tpu.vector_store %arg5[%c0_103, %c0_104, %c0_105], %309 {strides = array<i32>} : memref<1x8x128xf32, #tpu.memory_space<vmem>>, vector<1x8x128xf32>,
    return
  }
  func.func @transform_0(%arg0: i32) -> (i32, i32, i32) {
    %c0_i32 = arith.constant 0 : i32
    %c0_i32_0 = arith.constant 0 : i32
    %c0_i32_1 = arith.constant 0 : i32
    return %arg0, %c0_i32, %c0_i32_0 : i32, i32, i32
  }
  func.func @transform_1(%arg0: i32) -> (i32, i32, i32) {
    %c0_i32 = arith.constant 0 : i32
    %c0_i32_0 = arith.constant 0 : i32
    %c0_i32_1 = arith.constant 0 : i32
    return %arg0, %c0_i32, %c0_i32_0 : i32, i32, i32
  }
  func.func @transform_2(%arg0: i32) -> (i32, i32) {
    %c0_i32 = arith.constant 0 : i32
    %c0_i32_0 = arith.constant 0 : i32
    %c0_i32_1 = arith.constant 0 : i32
    return %c0_i32, %c0_i32_0 : i32, i32
  }
  func.func @transform_3(%arg0: i32) -> (i32, i32) {
    %c0_i32 = arith.constant 0 : i32
    %c0_i32_0 = arith.constant 0 : i32
    %c0_i32_1 = arith.constant 0 : i32
    return %c0_i32, %c0_i32_0 : i32, i32
  }
  func.func @transform_4(%arg0: i32) -> (i32, i32, i32) {
    %c0_i32 = arith.constant 0 : i32
    %c0_i32_0 = arith.constant 0 : i32
    %c0_i32_1 = arith.constant 0 : i32
    return %arg0, %c0_i32, %c0_i32_0 : i32, i32, i32
  }
}

</mosaic_0001>

<llo_original>
// kernel: joint_bert_forward.1
$region0: #{joint_bert_forward.1}
  #allocation0 [shape = 'u32[]', space=smem, size = 0x4, offset = 0x4, fixed_abs, tag = 'smem constant byte address 0x4 - core index']
  #allocation1 [shape = 'u32[144,128]{1,0:T(1,128)}', space=vmem, size = 0x12000, scoped, tag = 'internal scratch']
  %s0 = inlined_call_operand.vmem [shape: s32[2,8,1], index: 0, kind: input, shape index: {}]
  %s1 = inlined_call_operand.vmem [shape: f32[2,1,8], index: 1, kind: input, shape index: {}]
  %s2 = inlined_call_operand.vmem [shape: bf16[464,128], index: 2, kind: input, shape index: {}]
  %s3 = inlined_call_operand.vmem [shape: f32[40,128], index: 3, kind: input, shape index: {}]
  %s4 = inlined_call_operand.vmem [shape: f32[2,8,128], index: 4, kind: output, shape index: {}]
  %s5 = sld [smem:[#allocation0]]
  $region49: #{joint_bert_forward.1} parent=0
    _
  %s7 = ssub.s32 1, %s5
  %s8 = scalar_select 0, %s7, %s5
  loop: start=0, step=1, limit=4
  $region2: #{joint_bert_forward.1} parent=0 // loop_pre_header
    _
  $region3: #{joint_bert_forward.1} parent=0 // loop_header
    %s10 = sphi 0, %s14
    %p11 = scmp.ge.s32.totalorder %s10, 4
    %s20 = sphi 0, %s22
    %s23 = sphi 0, %s20
    %s24 = sphi 0, %s23
    %s40 = sphi 0, %s24
    %s46 = sphi 0, %s48
    %s49 = sphi 0, %s46
    %s50 = sphi 0, %s49
    %s66 = sphi 0, %s50
    %s70 = sphi 0, %s70
    %s72 = sphi 0, %s70
    %s73 = sphi 0, %s72
    %s87 = sphi 0, %s73
    %s91 = sphi 0, %s91
    %s93 = sphi 0, %s91
    %s94 = sphi 0, %s93
    %s108 = sphi 0, %s94
    %s114 = sphi 0, %s116
    %s117 = sphi 0, %s114
    %s118 = sphi 0, %s117
    %s134 = sphi 0, %s118
  $region4: #{joint_bert_forward.1} parent=0 // loop_header_branch
    %13 = sbr.rel (%p11) target = $region8
  $region5: #{joint_bert_forward.1} parent=0 // loop_body
    %s15 = ssub.s32 %s10, 1
    %s16 = ssub.s32 %s10, 2
    %s17 = sadd.s32 %s10, 1
    %s18 = ssub.s32 %s10, %s17
    %p19 = scmp.eq.s32.totalorder %s18, 0
    %s21 = sadd.s32 %s20, 1
    %s22 = scalar_select %p19, %s20, %s21
    %p25 = pneg %p19
    %p26 = scmp.eq.s32.totalorder %s10, 1
    %p27 = por %p25, %p26
    %p28 = scmp.ne.s32.totalorder %s20, %s23
    %p29 = scmp.eq.s32.totalorder %s10, 0
    %p30 = por %p28, %p29
    %p31 = scmp.ne.s32.totalorder %s20, %s23
    %p32 = scmp.eq.s32.totalorder %s15, 1
    %p33 = por %p31, %p32
    %p34 = scmp.ne.s32.totalorder %s23, %s24
    %p35 = scmp.eq.s32.totalorder %s15, 0
    %p36 = por %p34, %p35
    %p37 = scmp.ne.s32.totalorder %s23, %s24
    %p38 = scmp.eq.s32.totalorder %s16, 1
    %p39 = por %p37, %p38
    %p41 = scmp.ne.s32.totalorder %s24, %s40
    %p42 = scmp.eq.s32.totalorder %s16, 0
    %p43 = por %p41, %p42
    %s44 = ssub.s32 %s10, %s17
    %p45 = scmp.eq.s32.totalorder %s44, 0
    %s47 = sadd.s32 %s46, 1
    %s48 = scalar_select %p45, %s46, %s47
    %p51 = pneg %p45
    %p52 = scmp.eq.s32.totalorder %s10, 1
    %p53 = por %p51, %p52
    %p54 = scmp.ne.s32.totalorder %s46, %s49
    %p55 = scmp.eq.s32.totalorder %s10, 0
    %p56 = por %p54, %p55
    %p57 = scmp.ne.s32.totalorder %s46, %s49
    %p58 = scmp.eq.s32.totalorder %s15, 1
    %p59 = por %p57, %p58
    %p60 = scmp.ne.s32.totalorder %s49, %s50
    %p61 = scmp.eq.s32.totalorder %s15, 0
    %p62 = por %p60, %p61
    %p63 = scmp.ne.s32.totalorder %s49, %s50
    %p64 = scmp.eq.s32.totalorder %s16, 1
    %p65 = por %p63, %p64
    %p67 = scmp.ne.s32.totalorder %s50, %s66
    %p68 = scmp.eq.s32.totalorder %s16, 0
    %p69 = por %p67, %p68
    %s71 = sadd.s32 %s70, 1
    %p74 = scmp.eq.s32.totalorder %s10, 1
    %p75 = scmp.ne.s32.totalorder %s70, %s72
    %p76 = scmp.eq.s32.totalorder %s10, 0
    %p77 = por %p75, %p76
    %p78 = scmp.ne.s32.totalorder %s70, %s72
    %p79 = scmp.eq.s32.totalorder %s15, 1
    %p80 = por %p78, %p79
    %p81 = scmp.ne.s32.totalorder %s72, %s73
    %p82 = scmp.eq.s32.totalorder %s15, 0
    %p83 = por %p81, %p82
    %p84 = scmp.ne.s32.totalorder %s72, %s73
    %p85 = scmp.eq.s32.totalorder %s16, 1
    %p86 = por %p84, %p85
    %p88 = scmp.ne.s32.totalorder %s73, %s87
    %p89 = scmp.eq.s32.totalorder %s16, 0
    %p90 = por %p88, %p89
    %s92 = sadd.s32 %s91, 1
    %p95 = scmp.eq.s32.totalorder %s10, 1
    %p96 = scmp.ne.s32.totalorder %s91, %s93
    %p97 = scmp.eq.s32.totalorder %s10, 0
    %p98 = por %p96, %p97
    %p99 = scmp.ne.s32.totalorder %s91, %s93
    %p100 = scmp.eq.s32.totalorder %s15, 1
    %p101 = por %p99, %p100
    %p102 = scmp.ne.s32.totalorder %s93, %s94
    %p103 = scmp.eq.s32.totalorder %s15, 0
    %p104 = por %p102, %p103
    %p105 = scmp.ne.s32.totalorder %s93, %s94
    %p106 = scmp.eq.s32.totalorder %s16, 1
    %p107 = por %p105, %p106
    %p109 = scmp.ne.s32.totalorder %s94, %s108
    %p110 = scmp.eq.s32.totalorder %s16, 0
    %p111 = por %p109, %p110
    %s112 = ssub.s32 %s10, %s17
    %p113 = scmp.eq.s32.totalorder %s112, 0
    %s115 = sadd.s32 %s114, 1
    %s116 = scalar_select %p113, %s114, %s115
    %p119 = pneg %p113
    %p120 = scmp.eq.s32.totalorder %s10, 1
    %p121 = por %p119, %p120
    %p122 = scmp.ne.s32.totalorder %s114, %s117
    %p123 = scmp.eq.s32.totalorder %s10, 0
    %p124 = por %p122, %p123
    %p125 = scmp.ne.s32.totalorder %s114, %s117
    %p126 = scmp.eq.s32.totalorder %s15, 1
    %p127 = por %p125, %p126
    %p128 = scmp.ne.s32.totalorder %s117, %s118
    %p129 = scmp.eq.s32.totalorder %s15, 0
    %p130 = por %p128, %p129
    %p131 = scmp.ne.s32.totalorder %s117, %s118
    %p132 = scmp.eq.s32.totalorder %s16, 1
    %p133 = por %p131, %p132
    %p135 = scmp.ne.s32.totalorder %s118, %s134
    %p136 = scmp.eq.s32.totalorder %s16, 0
    %p137 = por %p135, %p136
    %p138 = scmp.le.s32.totalorder 1, %s10
    %p139 = scmp.lt.s32.totalorder %s10, 3
    %p140 = pnand %p138, %p139
    %p141 = pneg %p140
    // Predicated region
    $region9: #{joint_bert_forward.1} parent=5 // pred_check
      _
    $region10: #{joint_bert_forward.1} parent=5 // pred_check_branch
      %143 = sbr.rel (%p140) target = $region12
    $region11: #{joint_bert_forward.1} parent=5 // pred_region
      %s144 = ssub.s32 %s10, 1
      // Predicated region
      $region13: #{joint_bert_forward.1} parent=11 // pred_check
        %p145 = pneg %p83
      $region14: #{joint_bert_forward.1} parent=11 // pred_check_branch
        %147 = sbr.rel (%p145) target = $region16
      $region15: #{joint_bert_forward.1} parent=11 // pred_region
        _
      $region16: #{joint_bert_forward.1} parent=11 // pred_fallthru
        _
      // Predicated region
      $region17: #{joint_bert_forward.1} parent=11 // pred_check
        %p148 = pneg %p104
      $region18: #{joint_bert_forward.1} parent=11 // pred_check_branch
        %150 = sbr.rel (%p148) target = $region20
      $region19: #{joint_bert_forward.1} parent=11 // pred_region
        _
      $region20: #{joint_bert_forward.1} parent=11 // pred_fallthru
        _
    $region12: #{joint_bert_forward.1} parent=5 // pred_fallthru
      _
    %p151 = scmp.lt.s32.totalorder %s10, 2
    // Predicated region
    $region21: #{joint_bert_forward.1} parent=5 // pred_check
      %p152 = pneg %p151
    $region22: #{joint_bert_forward.1} parent=5 // pred_check_branch
      %154 = sbr.rel (%p152) target = $region24
    $region23: #{joint_bert_forward.1} parent=5 // pred_region
      // Predicated region
      $region25: #{joint_bert_forward.1} parent=23 // pred_check
        %p155 = pneg %p30
      $region26: #{joint_bert_forward.1} parent=23 // pred_check_branch
        %157 = sbr.rel (%p155) target = $region28
      $region27: #{joint_bert_forward.1} parent=23 // pred_region
        %p158 = scmp.lt.s32.totalorder %s10, 1
        %s159 = scalar_select %p158, %s10, 1
        %s160 = smul.addr %s159, 8
        %s161 = scalar_lea.vmem %s0, %s160
      $region28: #{joint_bert_forward.1} parent=23 // pred_fallthru
        _
      // Predicated region
      $region29: #{joint_bert_forward.1} parent=23 // pred_check
        %p162 = pneg %p56
      $region30: #{joint_bert_forward.1} parent=23 // pred_check_branch
        %164 = sbr.rel (%p162) target = $region32
      $region31: #{joint_bert_forward.1} parent=23 // pred_region
        %p165 = scmp.lt.s32.totalorder %s10, 1
        %s166 = scalar_select %p165, %s10, 1
        %s167 = scalar_lea.vmem %s1, %s166
      $region32: #{joint_bert_forward.1} parent=23 // pred_fallthru
        _
    $region24: #{joint_bert_forward.1} parent=5 // pred_fallthru
      _
    %p168 = scmp.le.s32.totalorder 1, %s10
    %p169 = scmp.lt.s32.totalorder %s10, 3
    %p170 = pnand %p168, %p169
    %p171 = pneg %p170
    // Predicated region
    $region33: #{joint_bert_forward.1} parent=5 // pred_check
      _
    $region34: #{joint_bert_forward.1} parent=5 // pred_check_branch
      %173 = sbr.rel (%p170) target = $region36
    $region35: #{joint_bert_forward.1} parent=5 // pred_region
      %s174 = ssub.s32 %s10, 1
      %p175 = scmp.lt.s32.totalorder %s15, 1
      %s176 = scalar_select %p175, %s15, 1
      %s177 = smul.addr %s176, 8
      %s178 = scalar_lea.vmem %s0, %s177
      %p179 = pneg %p36
      %p180 = pneg %p33
      %p181 = scmp.lt.s32.totalorder %s15, 1
      %s182 = scalar_select %p181, %s15, 1
      %s183 = scalar_lea.vmem %s1, %s182
      %p184 = pneg %p62
      %p185 = pneg %p59
      %p186 = pneg %p83
      %p187 = pneg %p80
      %p188 = pneg %p104
      %p189 = pneg %p101
      %p190 = pneg %p130
      %p191 = pneg %p127
      %p192 = scmp.lt.s32.totalorder %s15, 1
      %s193 = scalar_select %p192, %s15, 1
      %s194 = smul.addr %s193, 8
      %s195 = scalar_lea.vmem %s4, %s194
      %p196 = scmp.lt.s32.totalorder %s15, 1
      %s197 = scalar_select %p196, %s15, 1
      %s198 = smul.addr %s197, 8
      %s199 = scalar_lea.vmem %s0, %s198
      %p200 = scmp.lt.s32.totalorder %s15, 1
      %s201 = scalar_select %p200, %s15, 1
      %s202 = scalar_lea.vmem %s1, %s201
      %p203 = scmp.lt.s32.totalorder %s15, 1
      %s204 = scalar_select %p203, %s15, 1
      %s205 = smul.addr %s204, 8
      %s206 = scalar_lea.vmem %s4, %s205
      %v208 = vld [vmem:[%s199] sm:$0xff]
      %v209 = vlaneseq
      %v210 = vand.u32 %v209, 127
      %211 = vset.pattern.permute.xlu0 0
      %212 = vperm.xlu0 %211, %v208
      %v213 = vpop.permute.xlu0 %212
      %vm214 = vcmp.eq.s32.totalorder %v210, %v213
      %v215 = vsel %vm214, 1.0, 0.0
      %v216 = vpack.c.bf16 %v215, %v215
      %v217 = vld [vmem:[%s2] sm:$0xf]
      %v218 = vld [vmem:[%s2 + $0x4] sm:$0xf]
      %v219 = vld [vmem:[%s2 + $0x8] sm:$0xf]
      %v220 = vld [vmem:[%s2 + $0xc] sm:$0xf]
      %v221 = vld [vmem:[%s2 + $0x10] sm:$0xf]
      %v222 = vld [vmem:[%s2 + $0x14] sm:$0xf]
      %v223 = vld [vmem:[%s2 + $0x18] sm:$0xf]
      %v224 = vld [vmem:[%s2 + $0x1c] sm:$0xf]
      %v225 = vld [vmem:[%s2 + $0x20] sm:$0xf]
      %v226 = vld [vmem:[%s2 + $0x24] sm:$0xf]
      %v227 = vld [vmem:[%s2 + $0x28] sm:$0xf]
      %v228 = vld [vmem:[%s2 + $0x2c] sm:$0xf]
      %v229 = vld [vmem:[%s2 + $0x30] sm:$0xf]
      %v230 = vld [vmem:[%s2 + $0x34] sm:$0xf]
      %v231 = vld [vmem:[%s3 + $0x8] sm:$0xff]
      %v246 = vunpack.c.l.b16 %v217
      %v247 = vunpack.c.l.b16 %v218
      %v248 = vunpack.c.l.b16 %v219
      %v249 = vunpack.c.l.b16 %v220
      %v250 = vunpack.c.l.b16 %v221
      %v251 = vunpack.c.l.b16 %v222
      %v252 = vunpack.c.l.b16 %v223
      %v253 = vunpack.c.l.b16 %v224
      %v254 = vunpack.c.l.b16 %v225
      %v255 = vunpack.c.l.b16 %v226
      %v256 = vunpack.c.l.b16 %v227
      %v257 = vunpack.c.l.b16 %v228
      %v258 = vunpack.c.l.b16 %v229
      %v259 = vunpack.c.l.b16 %v230
      %v260 = vpack.c.b16 %v247, %v246
      %v261 = vpack.c.b16 %v249, %v248
      %v262 = vpack.c.b16 %v251, %v250
      %v263 = vpack.c.b16 %v253, %v252
      %v264 = vpack.c.b16 %v255, %v254
      %v265 = vpack.c.b16 %v257, %v256
      %v266 = vpack.c.b16 %v259, %v258
      %vm274 = vcmask 916480
      %v276 = vsel %vm274, %v216, 0
      %278 = vmatprep.subr.bf16.mxu0 0
      %279 = vmatpush1.bf16.msra.mxu0 %v260
      %280 = vmatprep.subr.bf16.mxu0 0
      %281 = vmatpush1.bf16.msra.mxu0 %v261
      %282 = vmatprep.subr.bf16.mxu0 0
      %283 = vmatpush1.bf16.msra.mxu0 %v262
      %284 = vmatprep.subr.bf16.mxu0 0
      %285 = vmatpush1.bf16.msra.mxu0 %v263
      %286 = vmatprep.subr.bf16.mxu0 0
      %287 = vmatpush1.bf16.msra.mxu0 %v264
      %288 = vmatprep.subr.bf16.mxu0 0
      %289 = vmatpush1.bf16.msra.mxu0 %v265
      %290 = vmatprep.subr.bf16.mxu0 0
      %291 = vmatpush1.bf16.msra.mxu0 %v266
      %292 = vmatprep.subr.bf16.mxu0 0
      %293 = vmatpush1.bf16.msra.mxu0 0
      %294 = vmatprep.subr.bf16.mxu0 0
      %295 = vmatpush1.bf16.msra.mxu0 0
      %296 = vmatprep.subr.bf16.mxu0 0
      %297 = vmatpush1.bf16.msra.mxu0 0
      %298 = vmatprep.subr.bf16.mxu0 0
      %299 = vmatpush1.bf16.msra.mxu0 0
      %300 = vmatprep.subr.bf16.mxu0 0
      %301 = vmatpush1.bf16.msra.mxu0 0
      %302 = vmatprep.subr.bf16.mxu0 0
      %303 = vmatpush1.bf16.msra.mxu0 0
      %304 = vmatprep.subr.bf16.mxu0 0
      %305 = vmatpush1.bf16.msra.mxu0 0
      %306 = vmatprep.subr.bf16.mxu0 0
      %307 = vmatpush1.bf16.msra.mxu0 0
      %308 = vmatprep.subr.bf16.mxu0 0
      %309 = vmatpush1.bf16.msra.mxu0 0
      %310 = vmatprep.mubr.bf16.mxu0 0
      %311 = vmatmul.mubr.bf16.gmra.mrb[0].mxu0 %v276
      %v312 = vpop.f32.mrb[0].mxu0
      %v313 = vadd.f32 %v231, %v312
      %v314 = vpop.f32.mrb[0].mxu0
      %v315 = vpop.f32.mrb[0].mxu0
      %v316 = vpop.f32.mrb[0].mxu0
      %317 = vdwg.mxu0
      %v318 = vld [vmem:[%s3] sm:$0x1]
      %v319 = vld [vmem:[%s3 + $0x1] sm:$0x1]
      %vm320 = vcmask 261120
      %v321 = vsel %vm320, %v313, 0.0
      %322 = vadd.xlane.f32.xlu0 %v321
      %v323 = vpop.xlane.xlu0 %322
      %v324 = vrcp.pop 32.0
      %v325 = vmul.f32 %v323, %v324
      %v326 = vsub.f32 %v313, %v325
      %v327 = vmul.f32 %v326, %v326
      %v328 = vsel %vm320, %v327, 0.0
      %329 = vadd.xlane.f32.xlu0 %v328
      %v330 = vpop.xlane.xlu0 %329
      %v331 = vmul.f32 %v330, %v324
      %v332 = vadd.f32 %v331, 1e-12
      %v333 = vrsqrt.pop %v332
      %v334 = vmul.f32 %v326, %v333
      %v335 = vlaneseq
      %v336 = vshrl.u32 %v335, 7
      %v337 = vsub.s32 0, %v336
      %v338 = vrot.slane %v318, %v337
      %v339 = vmul.f32 %v334, %v338
      %v340 = vlaneseq
      %v341 = vshrl.u32 %v340, 7
      %v342 = vsub.s32 0, %v341
      %v343 = vrot.slane %v319, %v342
      %v344 = vadd.f32 %v339, %v343
      %v345 = vld [vmem:[%s202] sm:$0x1]
      %v346 = vsub.f32 1.0, %v345
      %v347 = vmul.f32 %v346, -10000.0
      %v348 = vpack.c.bf16 %v344, %v344
      %v349 = vld [vmem:[%s2 + $0x38] sm:$0xf]
      %v350 = vld [vmem:[%s2 + $0x3c] sm:$0xf]
      %v351 = vld [vmem:[%s2 + $0x40] sm:$0xf]
      %v352 = vld [vmem:[%s2 + $0x44] sm:$0xf]
      %v353 = vld [vmem:[%s3 + $0x10] sm:$0x1]
      %v354 = vlaneseq
      %v355 = vshrl.u32 %v354, 7
      %v356 = vsub.s32 0, %v355
      %v357 = vrot.slane %v353, %v356
      %v362 = vunpack.c.l.b16 %v349
      %v363 = vunpack.c.l.b16 %v350
      %v364 = vunpack.c.l.b16 %v351
      %v365 = vunpack.c.l.b16 %v352
      %v366 = vpack.c.b16 %v363, %v362
      %v367 = vpack.c.b16 %v365, %v364
      %v371 = vsel %vm320, %v348, 0
      %373 = vmatprep.subr.bf16.mxu0 0
      %374 = vmatpush1.bf16.msra.mxu0 %v366
      %375 = vmatprep.subr.bf16.mxu0 0
      %376 = vmatpush1.bf16.msra.mxu0 %v367
      %377 = vmatprep.subr.bf16.mxu0 0
      %378 = vmatpush1.bf16.msra.mxu0 0
      %379 = vmatprep.subr.bf16.mxu0 0
      %380 = vmatpush1.bf16.msra.mxu0 0
      %381 = vmatprep.subr.bf16.mxu0 0
      %382 = vmatpush1.bf16.msra.mxu0 0
      %383 = vmatprep.subr.bf16.mxu0 0
      %384 = vmatpush1.bf16.msra.mxu0 0
      %385 = vmatprep.subr.bf16.mxu0 0
      %386 = vmatpush1.bf16.msra.mxu0 0
      %387 = vmatprep.subr.bf16.mxu0 0
      %388 = vmatpush1.bf16.msra.mxu0 0
      %389 = vmatprep.subr.bf16.mxu0 0
      %390 = vmatpush1.bf16.msra.mxu0 0
      %391 = vmatprep.subr.bf16.mxu0 0
      %392 = vmatpush1.bf16.msra.mxu0 0
      %393 = vmatprep.subr.bf16.mxu0 0
      %394 = vmatpush1.bf16.msra.mxu0 0
      %395 = vmatprep.subr.bf16.mxu0 0
      %396 = vmatpush1.bf16.msra.mxu0 0
      %397 = vmatprep.subr.bf16.mxu0 0
      %398 = vmatpush1.bf16.msra.mxu0 0
      %399 = vmatprep.subr.bf16.mxu0 0
      %400 = vmatpush1.bf16.msra.mxu0 0
      %401 = vmatprep.subr.bf16.mxu0 0
      %402 = vmatpush1.bf16.msra.mxu0 0
      %403 = vmatprep.subr.bf16.mxu0 0
      %404 = vmatpush1.bf16.msra.mxu0 0
      %405 = vmatprep.mubr.bf16.mxu0 0
      %406 = vmatmul.mubr.bf16.gmra.mrb[0].mxu0 %v371
      %v407 = vpop.f32.mrb[0].mxu0
      %v408 = vadd.f32 %v357, %v407
      %v409 = vpop.f32.mrb[0].mxu0
      %v410 = vpop.f32.mrb[0].mxu0
      %v411 = vpop.f32.mrb[0].mxu0
      %412 = vdwg.mxu0
      %v413 = vpack.c.bf16 %v408, %v408
      %415 = vrot.lane.b32.xlu0 %v413, 96
      %v416 = vpop.permute.xlu0 %415
      %vm417 = vcmask 130048
      %v419 = vsel %vm417, %v413, 0
      %v422 = vsel %vm417, %v416, 0
      %424 = vmatprep.subr.bf16.mxu0 0
      %425 = vmatpush1.bf16.xpose.msra.mxu0 %v422
      %426 = vmatprep.subr.bf16.mxu0 0
      %427 = vmatpush1.bf16.xpose.msra.mxu0 0
      %428 = vmatprep.subr.bf16.mxu0 0
      %429 = vmatpush1.bf16.xpose.msra.mxu0 0
      %430 = vmatprep.subr.bf16.mxu0 0
      %431 = vmatpush1.bf16.xpose.msra.mxu0 0
      %432 = vmatprep.subr.bf16.mxu0 0
      %433 = vmatpush1.bf16.xpose.msra.mxu0 0
      %434 = vmatprep.subr.bf16.mxu0 0
      %435 = vmatpush1.bf16.xpose.msra.mxu0 0
      %436 = vmatprep.subr.bf16.mxu0 0
      %437 = vmatpush1.bf16.xpose.msra.mxu0 0
      %438 = vmatprep.subr.bf16.mxu0 0
      %439 = vmatpush1.bf16.xpose.msra.mxu0 0
      %440 = vmatprep.subr.bf16.mxu0 0
      %441 = vmatpush1.bf16.xpose.msra.mxu0 0
      %442 = vmatprep.subr.bf16.mxu0 0
      %443 = vmatpush1.bf16.xpose.msra.mxu0 0
      %444 = vmatprep.subr.bf16.mxu0 0
      %445 = vmatpush1.bf16.xpose.msra.mxu0 0
      %446 = vmatprep.subr.bf16.mxu0 0
      %447 = vmatpush1.bf16.xpose.msra.mxu0 0
      %448 = vmatprep.subr.bf16.mxu0 0
      %449 = vmatpush1.bf16.xpose.msra.mxu0 0
      %450 = vmatprep.subr.bf16.mxu0 0
      %451 = vmatpush1.bf16.xpose.msra.mxu0 0
      %452 = vmatprep.subr.bf16.mxu0 0
      %453 = vmatpush1.bf16.xpose.msra.mxu0 0
      %454 = vmatprep.subr.bf16.mxu0 0
      %455 = vmatpush1.bf16.xpose.msra.mxu0 0
      %456 = vmatprep.mubr.bf16.mxu0 0
      %457 = vmatmul.mubr.bf16.gmra.mrb[0].mxu0 %v419
      %v458 = vpop.f32.mrb[0].mxu0
      %v459 = vadd.f32 0.0, %v458
      %v460 = vpop.f32.mrb[0].mxu0
      %v461 = vpop.f32.mrb[0].mxu0
      %v462 = vpop.f32.mrb[0].mxu0
      %463 = vdwg.mxu0
      %v464 = vmul.f32 %v459, 0.25
      %v466 = vlaneseq
      %v467 = vshrl.u32 %v466, 7
      %v468 = vsub.s32 0, %v467
      %v469 = vrot.slane %v347, %v468
      %v471 = vadd.f32 %v464, %v469
      %vm472 = vcmask 64512
      %v473 = vsel %vm472, %v471, -inf
      %474 = vmax.xlane.f32.xlu0 %v473
      %v475 = vpop.xlane.xlu0 %474
      %v476 = vsub.f32 %v471, %v475
      %v477 = vmul.f32 %v476, 1.442695
      %v478 = vpow.pop %v477
      %v479 = vsel %vm472, %v478, 0.0
      %480 = vadd.xlane.f32.xlu0 %v479
      %v481 = vpop.xlane.xlu0 %480
      %v482 = vrcp.pop %v481
      %v483 = vmul.f32 %v478, %v482
      %v484 = vpack.c.bf16 %v483, %v483
      %485 = vrot.lane.b32.xlu0 %v413, 64
      %v486 = vpop.permute.xlu0 %485
      %v488 = vsel %vm472, %v484, 0
      %vm490 = vcmask 1043456
      %v492 = vsel %vm490, %v486, 0
      %494 = vmatprep.subr.bf16.mxu0 0
      %495 = vmatpush1.bf16.msra.mxu0 %v492
      %496 = vmatprep.subr.bf16.mxu0 0
      %497 = vmatpush1.bf16.msra.mxu0 0
      %498 = vmatprep.subr.bf16.mxu0 0
      %499 = vmatpush1.bf16.msra.mxu0 0
      %500 = vmatprep.subr.bf16.mxu0 0
      %501 = vmatpush1.bf16.msra.mxu0 0
      %502 = vmatprep.subr.bf16.mxu0 0
      %503 = vmatpush1.bf16.msra.mxu0 0
      %504 = vmatprep.subr.bf16.mxu0 0
      %505 = vmatpush1.bf16.msra.mxu0 0
      %506 = vmatprep.subr.bf16.mxu0 0
      %507 = vmatpush1.bf16.msra.mxu0 0
      %508 = vmatprep.subr.bf16.mxu0 0
      %509 = vmatpush1.bf16.msra.mxu0 0
      %510 = vmatprep.subr.bf16.mxu0 0
      %511 = vmatpush1.bf16.msra.mxu0 0
      %512 = vmatprep.subr.bf16.mxu0 0
      %513 = vmatpush1.bf16.msra.mxu0 0
      %514 = vmatprep.subr.bf16.mxu0 0
      %515 = vmatpush1.bf16.msra.mxu0 0
      %516 = vmatprep.subr.bf16.mxu0 0
      %517 = vmatpush1.bf16.msra.mxu0 0
      %518 = vmatprep.subr.bf16.mxu0 0
      %519 = vmatpush1.bf16.msra.mxu0 0
      %520 = vmatprep.subr.bf16.mxu0 0
      %521 = vmatpush1.bf16.msra.mxu0 0
      %522 = vmatprep.subr.bf16.mxu0 0
      %523 = vmatpush1.bf16.msra.mxu0 0
      %524 = vmatprep.subr.bf16.mxu0 0
      %525 = vmatpush1.bf16.msra.mxu0 0
      %526 = vmatprep.mubr.bf16.mxu0 0
      %527 = vmatmul.mubr.bf16.gmra.mrb[0].mxu0 %v488
      %v528 = vpop.f32.mrb[0].mxu0
      %v529 = vadd.f32 0.0, %v528
      %v530 = vpop.f32.mrb[0].mxu0
      %v531 = vpop.f32.mrb[0].mxu0
      %v532 = vpop.f32.mrb[0].mxu0
      %533 = vdwg.mxu0
      %534 = vrot.lane.b32.xlu0 %v413, 112
      %v535 = vpop.permute.xlu0 %534
      %536 = vrot.lane.b32.xlu0 %v413, 80
      %v537 = vpop.permute.xlu0 %536
      %v539 = vsel %vm417, %v535, 0
      %v542 = vsel %vm417, %v537, 0
      %544 = vmatprep.subr.bf16.mxu0 0
      %545 = vmatpush1.bf16.xpose.msra.mxu0 %v542
      %546 = vmatprep.subr.bf16.mxu0 0
      %547 = vmatpush1.bf16.xpose.msra.mxu0 0
      %548 = vmatprep.subr.bf16.mxu0 0
      %549 = vmatpush1.bf16.xpose.msra.mxu0 0
      %550 = vmatprep.subr.bf16.mxu0 0
      %551 = vmatpush1.bf16.xpose.msra.mxu0 0
      %552 = vmatprep.subr.bf16.mxu0 0
      %553 = vmatpush1.bf16.xpose.msra.mxu0 0
      %554 = vmatprep.subr.bf16.mxu0 0
      %555 = vmatpush1.bf16.xpose.msra.mxu0 0
      %556 = vmatprep.subr.bf16.mxu0 0
      %557 = vmatpush1.bf16.xpose.msra.mxu0 0
      %558 = vmatprep.subr.bf16.mxu0 0
      %559 = vmatpush1.bf16.xpose.msra.mxu0 0
      %560 = vmatprep.subr.bf16.mxu0 0
      %561 = vmatpush1.bf16.xpose.msra.mxu0 0
      %562 = vmatprep.subr.bf16.mxu0 0
      %563 = vmatpush1.bf16.xpose.msra.mxu0 0
      %564 = vmatprep.subr.bf16.mxu0 0
      %565 = vmatpush1.bf16.xpose.msra.mxu0 0
      %566 = vmatprep.subr.bf16.mxu0 0
      %567 = vmatpush1.bf16.xpose.msra.mxu0 0
      %568 = vmatprep.subr.bf16.mxu0 0
      %569 = vmatpush1.bf16.xpose.msra.mxu0 0
      %570 = vmatprep.subr.bf16.mxu0 0
      %571 = vmatpush1.bf16.xpose.msra.mxu0 0
      %572 = vmatprep.subr.bf16.mxu0 0
      %573 = vmatpush1.bf16.xpose.msra.mxu0 0
      %574 = vmatprep.subr.bf16.mxu0 0
      %575 = vmatpush1.bf16.xpose.msra.mxu0 0
      %576 = vmatprep.mubr.bf16.mxu0 0
      %577 = vmatmul.mubr.bf16.gmra.mrb[0].mxu0 %v539
      %v578 = vpop.f32.mrb[0].mxu0
      %v579 = vadd.f32 0.0, %v578
      %v580 = vpop.f32.mrb[0].mxu0
      %v581 = vpop.f32.mrb[0].mxu0
      %v582 = vpop.f32.mrb[0].mxu0
      %583 = vdwg.mxu0
      %v584 = vmul.f32 %v579, 0.25
      %v585 = vadd.f32 %v584, %v469
      %v586 = vsel %vm472, %v585, -inf
      %587 = vmax.xlane.f32.xlu0 %v586
      %v588 = vpop.xlane.xlu0 %587
      %v589 = vsub.f32 %v585, %v588
      %v590 = vmul.f32 %v589, 1.442695
      %v591 = vpow.pop %v590
      %v592 = vsel %vm472, %v591, 0.0
      %593 = vadd.xlane.f32.xlu0 %v592
      %v594 = vpop.xlane.xlu0 %593
      %v595 = vrcp.pop %v594
      %v596 = vmul.f32 %v591, %v595
      %v597 = vpack.c.bf16 %v596, %v596
      %598 = vrot.lane.b32.xlu0 %v413, 48
      %v599 = vpop.permute.xlu0 %598
      %v601 = vsel %vm472, %v597, 0
      %v604 = vsel %vm490, %v599, 0
      %606 = vmatprep.subr.bf16.mxu0 0
      %607 = vmatpush1.bf16.msra.mxu0 %v604
      %608 = vmatprep.subr.bf16.mxu0 0
      %609 = vmatpush1.bf16.msra.mxu0 0
      %610 = vmatprep.subr.bf16.mxu0 0
      %611 = vmatpush1.bf16.msra.mxu0 0
      %612 = vmatprep.subr.bf16.mxu0 0
      %613 = vmatpush1.bf16.msra.mxu0 0
      %614 = vmatprep.subr.bf16.mxu0 0
      %615 = vmatpush1.bf16.msra.mxu0 0
      %616 = vmatprep.subr.bf16.mxu0 0
      %617 = vmatpush1.bf16.msra.mxu0 0
      %618 = vmatprep.subr.bf16.mxu0 0
      %619 = vmatpush1.bf16.msra.mxu0 0
      %620 = vmatprep.subr.bf16.mxu0 0
      %621 = vmatpush1.bf16.msra.mxu0 0
      %622 = vmatprep.subr.bf16.mxu0 0
      %623 = vmatpush1.bf16.msra.mxu0 0
      %624 = vmatprep.subr.bf16.mxu0 0
      %625 = vmatpush1.bf16.msra.mxu0 0
      %626 = vmatprep.subr.bf16.mxu0 0
      %627 = vmatpush1.bf16.msra.mxu0 0
      %628 = vmatprep.subr.bf16.mxu0 0
      %629 = vmatpush1.bf16.msra.mxu0 0
      %630 = vmatprep.subr.bf16.mxu0 0
      %631 = vmatpush1.bf16.msra.mxu0 0
      %632 = vmatprep.subr.bf16.mxu0 0
      %633 = vmatpush1.bf16.msra.mxu0 0
      %634 = vmatprep.subr.bf16.mxu0 0
      %635 = vmatpush1.bf16.msra.mxu0 0
      %636 = vmatprep.subr.bf16.mxu0 0
      %637 = vmatpush1.bf16.msra.mxu0 0
      %638 = vmatprep.mubr.bf16.mxu0 0
      %639 = vmatmul.mubr.bf16.gmra.mrb[0].mxu0 %v601
      %v640 = vpop.f32.mrb[0].mxu0
      %v641 = vadd.f32 0.0, %v640
      %v642 = vpop.f32.mrb[0].mxu0
      %v643 = vpop.f32.mrb[0].mxu0
      %v644 = vpop.f32.mrb[0].mxu0
      %645 = vdwg.mxu0
      %647 = vrot.lane.b32.xlu0 %v641, 16
      %v648 = vpop.permute.xlu0 %647
      %v650 = vsel %vm417, %v529, %v648
      %v651 = vpack.c.bf16 %v650, %v650
      %v652 = vld [vmem:[%s2 + $0x48] sm:$0xf]
      %v653 = vld [vmem:[%s2 + $0x4c] sm:$0xf]
      %v654 = vld [vmem:[%s2 + $0x50] sm:$0xf]
      %v655 = vld [vmem:[%s2 + $0x54] sm:$0xf]
      %v656 = vld [vmem:[%s3 + $0x11] sm:$0x1]
      %v657 = vlaneseq
      %v658 = vshrl.u32 %v657, 7
      %v659 = vsub.s32 0, %v658
      %v660 = vrot.slane %v656, %v659
      %v665 = vunpack.c.l.b16 %v652
      %v666 = vunpack.c.l.b16 %v653
      %v667 = vunpack.c.l.b16 %v654
      %v668 = vunpack.c.l.b16 %v655
      %v669 = vpack.c.b16 %v666, %v665
      %v670 = vpack.c.b16 %v668, %v667
      %v674 = vsel %vm320, %v651, 0
      %676 = vmatprep.subr.bf16.mxu0 0
      %677 = vmatpush1.bf16.msra.mxu0 %v669
      %678 = vmatprep.subr.bf16.mxu0 0
      %679 = vmatpush1.bf16.msra.mxu0 %v670
      %680 = vmatprep.subr.bf16.mxu0 0
      %681 = vmatpush1.bf16.msra.mxu0 0
      %682 = vmatprep.subr.bf16.mxu0 0
      %683 = vmatpush1.bf16.msra.mxu0 0
      %684 = vmatprep.subr.bf16.mxu0 0
      %685 = vmatpush1.bf16.msra.mxu0 0
      %686 = vmatprep.subr.bf16.mxu0 0
      %687 = vmatpush1.bf16.msra.mxu0 0
      %688 = vmatprep.subr.bf16.mxu0 0
      %689 = vmatpush1.bf16.msra.mxu0 0
      %690 = vmatprep.subr.bf16.mxu0 0
      %691 = vmatpush1.bf16.msra.mxu0 0
      %692 = vmatprep.subr.bf16.mxu0 0
      %693 = vmatpush1.bf16.msra.mxu0 0
      %694 = vmatprep.subr.bf16.mxu0 0
      %695 = vmatpush1.bf16.msra.mxu0 0
      %696 = vmatprep.subr.bf16.mxu0 0
      %697 = vmatpush1.bf16.msra.mxu0 0
      %698 = vmatprep.subr.bf16.mxu0 0
      %699 = vmatpush1.bf16.msra.mxu0 0
      %700 = vmatprep.subr.bf16.mxu0 0
      %701 = vmatpush1.bf16.msra.mxu0 0
      %702 = vmatprep.subr.bf16.mxu0 0
      %703 = vmatpush1.bf16.msra.mxu0 0
      %704 = vmatprep.subr.bf16.mxu0 0
      %705 = vmatpush1.bf16.msra.mxu0 0
      %706 = vmatprep.subr.bf16.mxu0 0
      %707 = vmatpush1.bf16.msra.mxu0 0
      %708 = vmatprep.mubr.bf16.mxu0 0
      %709 = vmatmul.mubr.bf16.gmra.mrb[0].mxu0 %v674
      %v710 = vpop.f32.mrb[0].mxu0
      %v711 = vadd.f32 %v660, %v710
      %v712 = vpop.f32.mrb[0].mxu0
      %v713 = vpop.f32.mrb[0].mxu0
      %v714 = vpop.f32.mrb[0].mxu0
      %715 = vdwg.mxu0
      %v716 = vadd.f32 %v344, %v711
      %v717 = vld [vmem:[%s3 + $0x12] sm:$0x1]
      %v718 = vld [vmem:[%s3 + $0x13] sm:$0x1]
      %v719 = vsel %vm320, %v716, 0.0
      %720 = vadd.xlane.f32.xlu0 %v719
      %v721 = vpop.xlane.xlu0 %720
      %v722 = vmul.f32 %v721, %v324
      %v723 = vsub.f32 %v716, %v722
      %v724 = vmul.f32 %v723, %v723
      %v725 = vsel %vm320, %v724, 0.0
      %726 = vadd.xlane.f32.xlu0 %v725
      %v727 = vpop.xlane.xlu0 %726
      %v728 = vmul.f32 %v727, %v324
      %v729 = vadd.f32 %v728, 1e-12
      %v730 = vrsqrt.pop %v729
      %v731 = vmul.f32 %v723, %v730
      %v732 = vlaneseq
      %v733 = vshrl.u32 %v732, 7
      %v734 = vsub.s32 0, %v733
      %v735 = vrot.slane %v717, %v734
      %v736 = vmul.f32 %v731, %v735
      %v737 = vlaneseq
      %v738 = vshrl.u32 %v737, 7
      %v739 = vsub.s32 0, %v738
      %v740 = vrot.slane %v718, %v739
      %v741 = vadd.f32 %v736, %v740
      %v742 = vpack.c.bf16 %v741, %v741
      %v743 = vld [vmem:[%s2 + $0x58] sm:$0xf]
      %v744 = vld [vmem:[%s2 + $0x5c] sm:$0xf]
      %v745 = vld [vmem:[%s2 + $0x60] sm:$0xf]
      %v746 = vld [vmem:[%s2 + $0x64] sm:$0xf]
      %v747 = vld [vmem:[%s3 + $0x14] sm:$0x1]
      %v748 = vlaneseq
      %v749 = vshrl.u32 %v748, 7
      %v750 = vsub.s32 0, %v749
      %v751 = vrot.slane %v747, %v750
      %v756 = vunpack.c.l.b16 %v743
      %v757 = vunpack.c.l.b16 %v744
      %v758 = vunpack.c.l.b16 %v745
      %v759 = vunpack.c.l.b16 %v746
      %v760 = vpack.c.b16 %v757, %v756
      %v761 = vpack.c.b16 %v759, %v758
      %v765 = vsel %vm320, %v742, 0
      %767 = vmatprep.subr.bf16.mxu0 0
      %768 = vmatpush1.bf16.msra.mxu0 %v760
      %769 = vmatprep.subr.bf16.mxu0 0
      %770 = vmatpush1.bf16.msra.mxu0 %v761
      %771 = vmatprep.subr.bf16.mxu0 0
      %772 = vmatpush1.bf16.msra.mxu0 0
      %773 = vmatprep.subr.bf16.mxu0 0
      %774 = vmatpush1.bf16.msra.mxu0 0
      %775 = vmatprep.subr.bf16.mxu0 0
      %776 = vmatpush1.bf16.msra.mxu0 0
      %777 = vmatprep.subr.bf16.mxu0 0
      %778 = vmatpush1.bf16.msra.mxu0 0
      %779 = vmatprep.subr.bf16.mxu0 0
      %780 = vmatpush1.bf16.msra.mxu0 0
      %781 = vmatprep.subr.bf16.mxu0 0
      %782 = vmatpush1.bf16.msra.mxu0 0
      %783 = vmatprep.subr.bf16.mxu0 0
      %784 = vmatpush1.bf16.msra.mxu0 0
      %785 = vmatprep.subr.bf16.mxu0 0
      %786 = vmatpush1.bf16.msra.mxu0 0
      %787 = vmatprep.subr.bf16.mxu0 0
      %788 = vmatpush1.bf16.msra.mxu0 0
      %789 = vmatprep.subr.bf16.mxu0 0
      %790 = vmatpush1.bf16.msra.mxu0 0
      %791 = vmatprep.subr.bf16.mxu0 0
      %792 = vmatpush1.bf16.msra.mxu0 0
      %793 = vmatprep.subr.bf16.mxu0 0
      %794 = vmatpush1.bf16.msra.mxu0 0
      %795 = vmatprep.subr.bf16.mxu0 0
      %796 = vmatpush1.bf16.msra.mxu0 0
      %797 = vmatprep.subr.bf16.mxu0 0
      %798 = vmatpush1.bf16.msra.mxu0 0
      %799 = vmatprep.mubr.bf16.mxu0 0
      %800 = vmatmul.mubr.bf16.gmra.mrb[0].mxu0 %v765
      %v801 = vpop.f32.mrb[0].mxu0
      %v802 = vadd.f32 %v751, %v801
      %v803 = vpop.f32.mrb[0].mxu0
      %v804 = vpop.f32.mrb[0].mxu0
      %v805 = vpop.f32.mrb[0].mxu0
      %806 = vdwg.mxu0
      %v807 = vmul.f32 %v802, 0.5
      %v808 = vmul.f32 %v802, 0.044715
      %v809 = vmul.f32 %v808, %v802
      %v810 = vmul.f32 %v809, %v802
      %v811 = vadd.f32 %v802, %v810
      %v812 = vmul.f32 %v811, 0.7978846
      %v813 = vtanh.pop %v812
      %v814 = vadd.f32 %v813, 1.0
      %v815 = vmul.f32 %v807, %v814
      %v816 = vpack.c.bf16 %v815, %v815
      %v817 = vld [vmem:[%s2 + $0x68] sm:$0xf]
      %v818 = vld [vmem:[%s2 + $0x6c] sm:$0xf]
      %v819 = vld [vmem:[%s2 + $0x70] sm:$0xf]
      %v820 = vld [vmem:[%s2 + $0x74] sm:$0xf]
      %v821 = vld [vmem:[%s2 + $0x78] sm:$0xf]
      %v822 = vld [vmem:[%s2 + $0x7c] sm:$0xf]
      %v823 = vld [vmem:[%s2 + $0x80] sm:$0xf]
      %v824 = vld [vmem:[%s2 + $0x84] sm:$0xf]
      %v825 = vld [vmem:[%s3 + $0x15] sm:$0x1]
      %v826 = vlaneseq
      %v827 = vshrl.u32 %v826, 7
      %v828 = vsub.s32 0, %v827
      %v829 = vrot.slane %v825, %v828
      %v838 = vunpack.c.l.b16 %v817
      %v839 = vunpack.c.l.b16 %v818
      %v840 = vunpack.c.l.b16 %v819
      %v841 = vunpack.c.l.b16 %v820
      %v842 = vunpack.c.l.b16 %v821
      %v843 = vunpack.c.l.b16 %v822
      %v844 = vunpack.c.l.b16 %v823
      %v845 = vunpack.c.l.b16 %v824
      %v846 = vpack.c.b16 %v839, %v838
      %v847 = vpack.c.b16 %v841, %v840
      %v848 = vpack.c.b16 %v843, %v842
      %v849 = vpack.c.b16 %v845, %v844
      %vm854 = vcmask 523264
      %v856 = vsel %vm854, %v816, 0
      %858 = vmatprep.subr.bf16.mxu0 0
      %859 = vmatpush1.bf16.msra.mxu0 %v846
      %860 = vmatprep.subr.bf16.mxu0 0
      %861 = vmatpush1.bf16.msra.mxu0 %v847
      %862 = vmatprep.subr.bf16.mxu0 0
      %863 = vmatpush1.bf16.msra.mxu0 %v848
      %864 = vmatprep.subr.bf16.mxu0 0
      %865 = vmatpush1.bf16.msra.mxu0 %v849
      %866 = vmatprep.subr.bf16.mxu0 0
      %867 = vmatpush1.bf16.msra.mxu0 0
      %868 = vmatprep.subr.bf16.mxu0 0
      %869 = vmatpush1.bf16.msra.mxu0 0
      %870 = vmatprep.subr.bf16.mxu0 0
      %871 = vmatpush1.bf16.msra.mxu0 0
      %872 = vmatprep.subr.bf16.mxu0 0
      %873 = vmatpush1.bf16.msra.mxu0 0
      %874 = vmatprep.subr.bf16.mxu0 0
      %875 = vmatpush1.bf16.msra.mxu0 0
      %876 = vmatprep.subr.bf16.mxu0 0
      %877 = vmatpush1.bf16.msra.mxu0 0
      %878 = vmatprep.subr.bf16.mxu0 0
      %879 = vmatpush1.bf16.msra.mxu0 0
      %880 = vmatprep.subr.bf16.mxu0 0
      %881 = vmatpush1.bf16.msra.mxu0 0
      %882 = vmatprep.subr.bf16.mxu0 0
      %883 = vmatpush1.bf16.msra.mxu0 0
      %884 = vmatprep.subr.bf16.mxu0 0
      %885 = vmatpush1.bf16.msra.mxu0 0
      %886 = vmatprep.subr.bf16.mxu0 0
      %887 = vmatpush1.bf16.msra.mxu0 0
      %888 = vmatprep.subr.bf16.mxu0 0
      %889 = vmatpush1.bf16.msra.mxu0 0
      %890 = vmatprep.mubr.bf16.mxu0 0
      %891 = vmatmul.mubr.bf16.gmra.mrb[0].mxu0 %v856
      %v892 = vpop.f32.mrb[0].mxu0
      %v893 = vadd.f32 %v829, %v892
      %v894 = vpop.f32.mrb[0].mxu0
      %v895 = vpop.f32.mrb[0].mxu0
      %v896 = vpop.f32.mrb[0].mxu0
      %897 = vdwg.mxu0
      %v898 = vadd.f32 %v741, %v893
      %v899 = vld [vmem:[%s3 + $0x16] sm:$0x1]
      %v900 = vld [vmem:[%s3 + $0x17] sm:$0x1]
      %v901 = vsel %vm320, %v898, 0.0
      %902 = vadd.xlane.f32.xlu0 %v901
      %v903 = vpop.xlane.xlu0 %902
      %v904 = vmul.f32 %v903, %v324
      %v905 = vsub.f32 %v898, %v904
      %v906 = vmul.f32 %v905, %v905
      %v907 = vsel %vm320, %v906, 0.0
      %908 = vadd.xlane.f32.xlu0 %v907
      %v909 = vpop.xlane.xlu0 %908
      %v910 = vmul.f32 %v909, %v324
      %v911 = vadd.f32 %v910, 1e-12
      %v912 = vrsqrt.pop %v911
      %v913 = vmul.f32 %v905, %v912
      %v914 = vlaneseq
      %v915 = vshrl.u32 %v914, 7
      %v916 = vsub.s32 0, %v915
      %v917 = vrot.slane %v899, %v916
      %v918 = vmul.f32 %v913, %v917
      %v919 = vlaneseq
      %v920 = vshrl.u32 %v919, 7
      %v921 = vsub.s32 0, %v920
      %v922 = vrot.slane %v900, %v921
      %v923 = vadd.f32 %v918, %v922
      %v924 = vpack.c.bf16 %v923, %v923
      %v925 = vld [vmem:[%s2 + $0x88] sm:$0xf]
      %v926 = vld [vmem:[%s2 + $0x8c] sm:$0xf]
      %v927 = vld [vmem:[%s2 + $0x90] sm:$0xf]
      %v928 = vld [vmem:[%s2 + $0x94] sm:$0xf]
      %v929 = vld [vmem:[%s3 + $0x18] sm:$0x1]
      %v930 = vlaneseq
      %v931 = vshrl.u32 %v930, 7
      %v932 = vsub.s32 0, %v931
      %v933 = vrot.slane %v929, %v932
      %v938 = vunpack.c.l.b16 %v925
      %v939 = vunpack.c.l.b16 %v926
      %v940 = vunpack.c.l.b16 %v927
      %v941 = vunpack.c.l.b16 %v928
      %v942 = vpack.c.b16 %v939, %v938
      %v943 = vpack.c.b16 %v941, %v940
      %v947 = vsel %vm320, %v924, 0
      %949 = vmatprep.subr.bf16.mxu0 0
      %950 = vmatpush1.bf16.msra.mxu0 %v942
      %951 = vmatprep.subr.bf16.mxu0 0
      %952 = vmatpush1.bf16.msra.mxu0 %v943
      %953 = vmatprep.subr.bf16.mxu0 0
      %954 = vmatpush1.bf16.msra.mxu0 0
      %955 = vmatprep.subr.bf16.mxu0 0
      %956 = vmatpush1.bf16.msra.mxu0 0
      %957 = vmatprep.subr.bf16.mxu0 0
      %958 = vmatpush1.bf16.msra.mxu0 0
      %959 = vmatprep.subr.bf16.mxu0 0
      %960 = vmatpush1.bf16.msra.mxu0 0
      %961 = vmatprep.subr.bf16.mxu0 0
      %962 = vmatpush1.bf16.msra.mxu0 0
      %963 = vmatprep.subr.bf16.mxu0 0
      %964 = vmatpush1.bf16.msra.mxu0 0
      %965 = vmatprep.subr.bf16.mxu0 0
      %966 = vmatpush1.bf16.msra.mxu0 0
      %967 = vmatprep.subr.bf16.mxu0 0
      %968 = vmatpush1.bf16.msra.mxu0 0
      %969 = vmatprep.subr.bf16.mxu0 0
      %970 = vmatpush1.bf16.msra.mxu0 0
      %971 = vmatprep.subr.bf16.mxu0 0
      %972 = vmatpush1.bf16.msra.mxu0 0
      %973 = vmatprep.subr.bf16.mxu0 0
      %974 = vmatpush1.bf16.msra.mxu0 0
      %975 = vmatprep.subr.bf16.mxu0 0
      %976 = vmatpush1.bf16.msra.mxu0 0
      %977 = vmatprep.subr.bf16.mxu0 0
      %978 = vmatpush1.bf16.msra.mxu0 0
      %979 = vmatprep.subr.bf16.mxu0 0
      %980 = vmatpush1.bf16.msra.mxu0 0
      %981 = vmatprep.mubr.bf16.mxu0 0
      %982 = vmatmul.mubr.bf16.gmra.mrb[0].mxu0 %v947
      %v983 = vpop.f32.mrb[0].mxu0
      %v984 = vadd.f32 %v933, %v983
      %v985 = vpop.f32.mrb[0].mxu0
      %v986 = vpop.f32.mrb[0].mxu0
      %v987 = vpop.f32.mrb[0].mxu0
      %988 = vdwg.mxu0
      %v989 = vpack.c.bf16 %v984, %v984
      %991 = vrot.lane.b32.xlu0 %v989, 96
      %v992 = vpop.permute.xlu0 %991
      %v994 = vsel %vm417, %v989, 0
      %v997 = vsel %vm417, %v992, 0
      %999 = vmatprep.subr.bf16.mxu0 0
      %1000 = vmatpush1.bf16.xpose.msra.mxu0 %v997
      %1001 = vmatprep.subr.bf16.mxu0 0
      %1002 = vmatpush1.bf16.xpose.msra.mxu0 0
      %1003 = vmatprep.subr.bf16.mxu0 0
      %1004 = vmatpush1.bf16.xpose.msra.mxu0 0
      %1005 = vmatprep.subr.bf16.mxu0 0
      %1006 = vmatpush1.bf16.xpose.msra.mxu0 0
      %1007 = vmatprep.subr.bf16.mxu0 0
      %1008 = vmatpush1.bf16.xpose.msra.mxu0 0
      %1009 = vmatprep.subr.bf16.mxu0 0
      %1010 = vmatpush1.bf16.xpose.msra.mxu0 0
      %1011 = vmatprep.subr.bf16.mxu0 0
      %1012 = vmatpush1.bf16.xpose.msra.mxu0 0
      %1013 = vmatprep.subr.bf16.mxu0 0
      %1014 = vmatpush1.bf16.xpose.msra.mxu0 0
      %1015 = vmatprep.subr.bf16.mxu0 0
      %1016 = vmatpush1.bf16.xpose.msra.mxu0 0
      %1017 = vmatprep.subr.bf16.mxu0 0
      %1018 = vmatpush1.bf16.xpose.msra.mxu0 0
      %1019 = vmatprep.subr.bf16.mxu0 0
      %1020 = vmatpush1.bf16.xpose.msra.mxu0 0
      %1021 = vmatprep.subr.bf16.mxu0 0
      %1022 = vmatpush1.bf16.xpose.msra.mxu0 0
      %1023 = vmatprep.subr.bf16.mxu0 0
      %1024 = vmatpush1.bf16.xpose.msra.mxu0 0
      %1025 = vmatprep.subr.bf16.mxu0 0
      %1026 = vmatpush1.bf16.xpose.msra.mxu0 0
      %1027 = vmatprep.subr.bf16.mxu0 0
      %1028 = vmatpush1.bf16.xpose.msra.mxu0 0
      %1029 = vmatprep.subr.bf16.mxu0 0
      %1030 = vmatpush1.bf16.xpose.msra.mxu0 0
      %1031 = vmatprep.mubr.bf16.mxu0 0
      %1032 = vmatmul.mubr.bf16.gmra.mrb[0].mxu0 %v994
      %v1033 = vpop.f32.mrb[0].mxu0
      %v1034 = vadd.f32 0.0, %v1033
      %v1035 = vpop.f32.mrb[0].mxu0
      %v1036 = vpop.f32.mrb[0].mxu0
      %v1037 = vpop.f32.mrb[0].mxu0
      %1038 = vdwg.mxu0
      %v1039 = vmul.f32 %v1034, 0.25
      %v1040 = vadd.f32 %v1039, %v469
      %v1041 = vsel %vm472, %v1040, -inf
      %1042 = vmax.xlane.f32.xlu0 %v1041
      %v1043 = vpop.xlane.xlu0 %1042
      %v1044 = vsub.f32 %v1040, %v1043
      %v1045 = vmul.f32 %v1044, 1.442695
      %v1046 = vpow.pop %v1045
      %v1047 = vsel %vm472, %v1046, 0.0
      %1048 = vadd.xlane.f32.xlu0 %v1047
      %v1049 = vpop.xlane.xlu0 %1048
      %v1050 = vrcp.pop %v1049
      %v1051 = vmul.f32 %v1046, %v1050
      %v1052 = vpack.c.bf16 %v1051, %v1051
      %1053 = vrot.lane.b32.xlu0 %v989, 64
      %v1054 = vpop.permute.xlu0 %1053
      %v1056 = vsel %vm472, %v1052, 0
      %v1059 = vsel %vm490, %v1054, 0
      %1061 = vmatprep.subr.bf16.mxu0 0
      %1062 = vmatpush1.bf16.msra.mxu0 %v1059
      %1063 = vmatprep.subr.bf16.mxu0 0
      %1064 = vmatpush1.bf16.msra.mxu0 0
      %1065 = vmatprep.subr.bf16.mxu0 0
      %1066 = vmatpush1.bf16.msra.mxu0 0
      %1067 = vmatprep.subr.bf16.mxu0 0
      %1068 = vmatpush1.bf16.msra.mxu0 0
      %1069 = vmatprep.subr.bf16.mxu0 0
      %1070 = vmatpush1.bf16.msra.mxu0 0
      %1071 = vmatprep.subr.bf16.mxu0 0
      %1072 = vmatpush1.bf16.msra.mxu0 0
      %1073 = vmatprep.subr.bf16.mxu0 0
      %1074 = vmatpush1.bf16.msra.mxu0 0
      %1075 = vmatprep.subr.bf16.mxu0 0
      %1076 = vmatpush1.bf16.msra.mxu0 0
      %1077 = vmatprep.subr.bf16.mxu0 0
      %1078 = vmatpush1.bf16.msra.mxu0 0
      %1079 = vmatprep.subr.bf16.mxu0 0
      %1080 = vmatpush1.bf16.msra.mxu0 0
      %1081 = vmatprep.subr.bf16.mxu0 0
      %1082 = vmatpush1.bf16.msra.mxu0 0
      %1083 = vmatprep.subr.bf16.mxu0 0
      %1084 = vmatpush1.bf16.msra.mxu0 0
      %1085 = vmatprep.subr.bf16.mxu0 0
      %1086 = vmatpush1.bf16.msra.mxu0 0
      %1087 = vmatprep.subr.bf16.mxu0 0
      %1088 = vmatpush1.bf16.msra.mxu0 0
      %1089 = vmatprep.subr.bf16.mxu0 0
      %1090 = vmatpush1.bf16.msra.mxu0 0
      %1091 = vmatprep.subr.bf16.mxu0 0
      %1092 = vmatpush1.bf16.msra.mxu0 0
      %1093 = vmatprep.mubr.bf16.mxu0 0
      %1094 = vmatmul.mubr.bf16.gmra.mrb[0].mxu0 %v1056
      %v1095 = vpop.f32.mrb[0].mxu0
      %v1096 = vadd.f32 0.0, %v1095
      %v1097 = vpop.f32.mrb[0].mxu0
      %v1098 = vpop.f32.mrb[0].mxu0
      %v1099 = vpop.f32.mrb[0].mxu0
      %1100 = vdwg.mxu0
      %1101 = vrot.lane.b32.xlu0 %v989, 112
      %v1102 = vpop.permute.xlu0 %1101
      %1103 = vrot.lane.b32.xlu0 %v989, 80
      %v1104 = vpop.permute.xlu0 %1103
      %v1106 = vsel %vm417, %v1102, 0
      %v1109 = vsel %vm417, %v1104, 0
      %1111 = vmatprep.subr.bf16.mxu0 0
      %1112 = vmatpush1.bf16.xpose.msra.mxu0 %v1109
      %1113 = vmatprep.subr.bf16.mxu0 0
      %1114 = vmatpush1.bf16.xpose.msra.mxu0 0
      %1115 = vmatprep.subr.bf16.mxu0 0
      %1116 = vmatpush1.bf16.xpose.msra.mxu0 0
      %1117 = vmatprep.subr.bf16.mxu0 0
      %1118 = vmatpush1.bf16.xpose.msra.mxu0 0
      %1119 = vmatprep.subr.bf16.mxu0 0
      %1120 = vmatpush1.bf16.xpose.msra.mxu0 0
      %1121 = vmatprep.subr.bf16.mxu0 0
      %1122 = vmatpush1.bf16.xpose.msra.mxu0 0
      %1123 = vmatprep.subr.bf16.mxu0 0
      %1124 = vmatpush1.bf16.xpose.msra.mxu0 0
      %1125 = vmatprep.subr.bf16.mxu0 0
      %1126 = vmatpush1.bf16.xpose.msra.mxu0 0
      %1127 = vmatprep.subr.bf16.mxu0 0
      %1128 = vmatpush1.bf16.xpose.msra.mxu0 0
      %1129 = vmatprep.subr.bf16.mxu0 0
      %1130 = vmatpush1.bf16.xpose.msra.mxu0 0
      %1131 = vmatprep.subr.bf16.mxu0 0
      %1132 = vmatpush1.bf16.xpose.msra.mxu0 0
      %1133 = vmatprep.subr.bf16.mxu0 0
      %1134 = vmatpush1.bf16.xpose.msra.mxu0 0
      %1135 = vmatprep.subr.bf16.mxu0 0
      %1136 = vmatpush1.bf16.xpose.msra.mxu0 0
      %1137 = vmatprep.subr.bf16.mxu0 0
      %1138 = vmatpush1.bf16.xpose.msra.mxu0 0
      %1139 = vmatprep.subr.bf16.mxu0 0
      %1140 = vmatpush1.bf16.xpose.msra.mxu0 0
      %1141 = vmatprep.subr.bf16.mxu0 0
      %1142 = vmatpush1.bf16.xpose.msra.mxu0 0
      %1143 = vmatprep.mubr.bf16.mxu0 0
      %1144 = vmatmul.mubr.bf16.gmra.mrb[0].mxu0 %v1106
      %v1145 = vpop.f32.mrb[0].mxu0
      %v1146 = vadd.f32 0.0, %v1145
      %v1147 = vpop.f32.mrb[0].mxu0
      %v1148 = vpop.f32.mrb[0].mxu0
      %v1149 = vpop.f32.mrb[0].mxu0
      %1150 = vdwg.mxu0
      %v1151 = vmul.f32 %v1146, 0.25
      %v1152 = vadd.f32 %v1151, %v469
      %v1153 = vsel %vm472, %v1152, -inf
      %1154 = vmax.xlane.f32.xlu0 %v1153
      %v1155 = vpop.xlane.xlu0 %1154
      %v1156 = vsub.f32 %v1152, %v1155
      %v1157 = vmul.f32 %v1156, 1.442695
      %v1158 = vpow.pop %v1157
      %v1159 = vsel %vm472, %v1158, 0.0
      %1160 = vadd.xlane.f32.xlu0 %v1159
      %v1161 = vpop.xlane.xlu0 %1160
      %v1162 = vrcp.pop %v1161
      %v1163 = vmul.f32 %v1158, %v1162
      %v1164 = vpack.c.bf16 %v1163, %v1163
      %1165 = vrot.lane.b32.xlu0 %v989, 48
      %v1166 = vpop.permute.xlu0 %1165
      %v1168 = vsel %vm472, %v1164, 0
      %v1171 = vsel %vm490, %v1166, 0
      %1173 = vmatprep.subr.bf16.mxu0 0
      %1174 = vmatpush1.bf16.msra.mxu0 %v1171
      %1175 = vmatprep.subr.bf16.mxu0 0
      %1176 = vmatpush1.bf16.msra.mxu0 0
      %1177 = vmatprep.subr.bf16.mxu0 0
      %1178 = vmatpush1.bf16.msra.mxu0 0
      %1179 = vmatprep.subr.bf16.mxu0 0
      %1180 = vmatpush1.bf16.msra.mxu0 0
      %1181 = vmatprep.subr.bf16.mxu0 0
      %1182 = vmatpush1.bf16.msra.mxu0 0
      %1183 = vmatprep.subr.bf16.mxu0 0
      %1184 = vmatpush1.bf16.msra.mxu0 0
      %1185 = vmatprep.subr.bf16.mxu0 0
      %1186 = vmatpush1.bf16.msra.mxu0 0
      %1187 = vmatprep.subr.bf16.mxu0 0
      %1188 = vmatpush1.bf16.msra.mxu0 0
      %1189 = vmatprep.subr.bf16.mxu0 0
      %1190 = vmatpush1.bf16.msra.mxu0 0
      %1191 = vmatprep.subr.bf16.mxu0 0
      %1192 = vmatpush1.bf16.msra.mxu0 0
      %1193 = vmatprep.subr.bf16.mxu0 0
      %1194 = vmatpush1.bf16.msra.mxu0 0
      %1195 = vmatprep.subr.bf16.mxu0 0
      %1196 = vmatpush1.bf16.msra.mxu0 0
      %1197 = vmatprep.subr.bf16.mxu0 0
      %1198 = vmatpush1.bf16.msra.mxu0 0
      %1199 = vmatprep.subr.bf16.mxu0 0
      %1200 = vmatpush1.bf16.msra.mxu0 0
      %1201 = vmatprep.subr.bf16.mxu0 0
      %1202 = vmatpush1.bf16.msra.mxu0 0
      %1203 = vmatprep.subr.bf16.mxu0 0
      %1204 = vmatpush1.bf16.msra.mxu0 0
      %1205 = vmatprep.mubr.bf16.mxu0 0
      %1206 = vmatmul.mubr.bf16.gmra.mrb[0].mxu0 %v1168
      %v1207 = vpop.f32.mrb[0].mxu0
      %v1208 = vadd.f32 0.0, %v1207
      %v1209 = vpop.f32.mrb[0].mxu0
      %v1210 = vpop.f32.mrb[0].mxu0
      %v1211 = vpop.f32.mrb[0].mxu0
      %1212 = vdwg.mxu0
      %1214 = vrot.lane.b32.xlu0 %v1208, 16
      %v1215 = vpop.permute.xlu0 %1214
      %v1217 = vsel %vm417, %v1096, %v1215
      %v1218 = vpack.c.bf16 %v1217, %v1217
      %v1219 = vld [vmem:[%s2 + $0x98] sm:$0xf]
      %v1220 = vld [vmem:[%s2 + $0x9c] sm:$0xf]
      %v1221 = vld [vmem:[%s2 + $0xa0] sm:$0xf]
      %v1222 = vld [vmem:[%s2 + $0xa4] sm:$0xf]
      %v1223 = vld [vmem:[%s3 + $0x19] sm:$0x1]
      %v1224 = vlaneseq
      %v1225 = vshrl.u32 %v1224, 7
      %v1226 = vsub.s32 0, %v1225
      %v1227 = vrot.slane %v1223, %v1226
      %v1232 = vunpack.c.l.b16 %v1219
      %v1233 = vunpack.c.l.b16 %v1220
      %v1234 = vunpack.c.l.b16 %v1221
      %v1235 = vunpack.c.l.b16 %v1222
      %v1236 = vpack.c.b16 %v1233, %v1232
      %v1237 = vpack.c.b16 %v1235, %v1234
      %v1241 = vsel %vm320, %v1218, 0
      %1243 = vmatprep.subr.bf16.mxu0 0
      %1244 = vmatpush1.bf16.msra.mxu0 %v1236
      %1245 = vmatprep.subr.bf16.mxu0 0
      %1246 = vmatpush1.bf16.msra.mxu0 %v1237
      %1247 = vmatprep.subr.bf16.mxu0 0
      %1248 = vmatpush1.bf16.msra.mxu0 0
      %1249 = vmatprep.subr.bf16.mxu0 0
      %1250 = vmatpush1.bf16.msra.mxu0 0
      %1251 = vmatprep.subr.bf16.mxu0 0
      %1252 = vmatpush1.bf16.msra.mxu0 0
      %1253 = vmatprep.subr.bf16.mxu0 0
      %1254 = vmatpush1.bf16.msra.mxu0 0
      %1255 = vmatprep.subr.bf16.mxu0 0
      %1256 = vmatpush1.bf16.msra.mxu0 0
      %1257 = vmatprep.subr.bf16.mxu0 0
      %1258 = vmatpush1.bf16.msra.mxu0 0
      %1259 = vmatprep.subr.bf16.mxu0 0
      %1260 = vmatpush1.bf16.msra.mxu0 0
      %1261 = vmatprep.subr.bf16.mxu0 0
      %1262 = vmatpush1.bf16.msra.mxu0 0
      %1263 = vmatprep.subr.bf16.mxu0 0
      %1264 = vmatpush1.bf16.msra.mxu0 0
      %1265 = vmatprep.subr.bf16.mxu0 0
      %1266 = vmatpush1.bf16.msra.mxu0 0
      %1267 = vmatprep.subr.bf16.mxu0 0
      %1268 = vmatpush1.bf16.msra.mxu0 0
      %1269 = vmatprep.subr.bf16.mxu0 0
      %1270 = vmatpush1.bf16.msra.mxu0 0
      %1271 = vmatprep.subr.bf16.mxu0 0
      %1272 = vmatpush1.bf16.msra.mxu0 0
      %1273 = vmatprep.subr.bf16.mxu0 0
      %1274 = vmatpush1.bf16.msra.mxu0 0
      %1275 = vmatprep.mubr.bf16.mxu0 0
      %1276 = vmatmul.mubr.bf16.gmra.mrb[0].mxu0 %v1241
      %v1277 = vpop.f32.mrb[0].mxu0
      %v1278 = vadd.f32 %v1227, %v1277
      %v1279 = vpop.f32.mrb[0].mxu0
      %v1280 = vpop.f32.mrb[0].mxu0
      %v1281 = vpop.f32.mrb[0].mxu0
      %1282 = vdwg.mxu0
      %v1283 = vadd.f32 %v923, %v1278
      %v1284 = vld [vmem:[%s3 + $0x1a] sm:$0x1]
      %v1285 = vld [vmem:[%s3 + $0x1b] sm:$0x1]
      %v1286 = vsel %vm320, %v1283, 0.0
      %1287 = vadd.xlane.f32.xlu0 %v1286
      %v1288 = vpop.xlane.xlu0 %1287
      %v1289 = vmul.f32 %v1288, %v324
      %v1290 = vsub.f32 %v1283, %v1289
      %v1291 = vmul.f32 %v1290, %v1290
      %v1292 = vsel %vm320, %v1291, 0.0
      %1293 = vadd.xlane.f32.xlu0 %v1292
      %v1294 = vpop.xlane.xlu0 %1293
      %v1295 = vmul.f32 %v1294, %v324
      %v1296 = vadd.f32 %v1295, 1e-12
      %v1297 = vrsqrt.pop %v1296
      %v1298 = vmul.f32 %v1290, %v1297
      %v1299 = vlaneseq
      %v1300 = vshrl.u32 %v1299, 7
      %v1301 = vsub.s32 0, %v1300
      %v1302 = vrot.slane %v1284, %v1301
      %v1303 = vmul.f32 %v1298, %v1302
      %v1304 = vlaneseq
      %v1305 = vshrl.u32 %v1304, 7
      %v1306 = vsub.s32 0, %v1305
      %v1307 = vrot.slane %v1285, %v1306
      %v1308 = vadd.f32 %v1303, %v1307
      %v1309 = vpack.c.bf16 %v1308, %v1308
      %v1310 = vld [vmem:[%s2 + $0xa8] sm:$0xf]
      %v1311 = vld [vmem:[%s2 + $0xac] sm:$0xf]
      %v1312 = vld [vmem:[%s2 + $0xb0] sm:$0xf]
      %v1313 = vld [vmem:[%s2 + $0xb4] sm:$0xf]
      %v1314 = vld [vmem:[%s3 + $0x1c] sm:$0x1]
      %v1315 = vlaneseq
      %v1316 = vshrl.u32 %v1315, 7
      %v1317 = vsub.s32 0, %v1316
      %v1318 = vrot.slane %v1314, %v1317
      %v1323 = vunpack.c.l.b16 %v1310
      %v1324 = vunpack.c.l.b16 %v1311
      %v1325 = vunpack.c.l.b16 %v1312
      %v1326 = vunpack.c.l.b16 %v1313
      %v1327 = vpack.c.b16 %v1324, %v1323
      %v1328 = vpack.c.b16 %v1326, %v1325
      %v1332 = vsel %vm320, %v1309, 0
      %1334 = vmatprep.subr.bf16.mxu0 0
      %1335 = vmatpush1.bf16.msra.mxu0 %v1327
      %1336 = vmatprep.subr.bf16.mxu0 0
      %1337 = vmatpush1.bf16.msra.mxu0 %v1328
      %1338 = vmatprep.subr.bf16.mxu0 0
      %1339 = vmatpush1.bf16.msra.mxu0 0
      %1340 = vmatprep.subr.bf16.mxu0 0
      %1341 = vmatpush1.bf16.msra.mxu0 0
      %1342 = vmatprep.subr.bf16.mxu0 0
      %1343 = vmatpush1.bf16.msra.mxu0 0
      %1344 = vmatprep.subr.bf16.mxu0 0
      %1345 = vmatpush1.bf16.msra.mxu0 0
      %1346 = vmatprep.subr.bf16.mxu0 0
      %1347 = vmatpush1.bf16.msra.mxu0 0
      %1348 = vmatprep.subr.bf16.mxu0 0
      %1349 = vmatpush1.bf16.msra.mxu0 0
      %1350 = vmatprep.subr.bf16.mxu0 0
      %1351 = vmatpush1.bf16.msra.mxu0 0
      %1352 = vmatprep.subr.bf16.mxu0 0
      %1353 = vmatpush1.bf16.msra.mxu0 0
      %1354 = vmatprep.subr.bf16.mxu0 0
      %1355 = vmatpush1.bf16.msra.mxu0 0
      %1356 = vmatprep.subr.bf16.mxu0 0
      %1357 = vmatpush1.bf16.msra.mxu0 0
      %1358 = vmatprep.subr.bf16.mxu0 0
      %1359 = vmatpush1.bf16.msra.mxu0 0
      %1360 = vmatprep.subr.bf16.mxu0 0
      %1361 = vmatpush1.bf16.msra.mxu0 0
      %1362 = vmatprep.subr.bf16.mxu0 0
      %1363 = vmatpush1.bf16.msra.mxu0 0
      %1364 = vmatprep.subr.bf16.mxu0 0
      %1365 = vmatpush1.bf16.msra.mxu0 0
      %1366 = vmatprep.mubr.bf16.mxu0 0
      %1367 = vmatmul.mubr.bf16.gmra.mrb[0].mxu0 %v1332
      %v1368 = vpop.f32.mrb[0].mxu0
      %v1369 = vadd.f32 %v1318, %v1368
      %v1370 = vpop.f32.mrb[0].mxu0
      %v1371 = vpop.f32.mrb[0].mxu0
      %v1372 = vpop.f32.mrb[0].mxu0
      %1373 = vdwg.mxu0
      %v1374 = vmul.f32 %v1369, 0.5
      %v1375 = vmul.f32 %v1369, 0.044715
      %v1376 = vmul.f32 %v1375, %v1369
      %v1377 = vmul.f32 %v1376, %v1369
      %v1378 = vadd.f32 %v1369, %v1377
      %v1379 = vmul.f32 %v1378, 0.7978846
      %v1380 = vtanh.pop %v1379
      %v1381 = vadd.f32 %v1380, 1.0
      %v1382 = vmul.f32 %v1374, %v1381
      %v1383 = vpack.c.bf16 %v1382, %v1382
      %v1384 = vld [vmem:[%s2 + $0xb8] sm:$0xf]
      %v1385 = vld [vmem:[%s2 + $0xbc] sm:$0xf]
      %v1386 = vld [vmem:[%s2 + $0xc0] sm:$0xf]
      %v1387 = vld [vmem:[%s2 + $0xc4] sm:$0xf]
      %v1388 = vld [vmem:[%s2 + $0xc8] sm:$0xf]
      %v1389 = vld [vmem:[%s2 + $0xcc] sm:$0xf]
      %v1390 = vld [vmem:[%s2 + $0xd0] sm:$0xf]
      %v1391 = vld [vmem:[%s2 + $0xd4] sm:$0xf]
      %v1392 = vld [vmem:[%s3 + $0x1d] sm:$0x1]
      %v1393 = vlaneseq
      %v1394 = vshrl.u32 %v1393, 7
      %v1395 = vsub.s32 0, %v1394
      %v1396 = vrot.slane %v1392, %v1395
      %v1405 = vunpack.c.l.b16 %v1384
      %v1406 = vunpack.c.l.b16 %v1385
      %v1407 = vunpack.c.l.b16 %v1386
      %v1408 = vunpack.c.l.b16 %v1387
      %v1409 = vunpack.c.l.b16 %v1388
      %v1410 = vunpack.c.l.b16 %v1389
      %v1411 = vunpack.c.l.b16 %v1390
      %v1412 = vunpack.c.l.b16 %v1391
      %v1413 = vpack.c.b16 %v1406, %v1405
      %v1414 = vpack.c.b16 %v1408, %v1407
      %v1415 = vpack.c.b16 %v1410, %v1409
      %v1416 = vpack.c.b16 %v1412, %v1411
      %v1422 = vsel %vm854, %v1383, 0
      %1424 = vmatprep.subr.bf16.mxu0 0
      %1425 = vmatpush1.bf16.msra.mxu0 %v1413
      %1426 = vmatprep.subr.bf16.mxu0 0
      %1427 = vmatpush1.bf16.msra.mxu0 %v1414
      %1428 = vmatprep.subr.bf16.mxu0 0
      %1429 = vmatpush1.bf16.msra.mxu0 %v1415
      %1430 = vmatprep.subr.bf16.mxu0 0
      %1431 = vmatpush1.bf16.msra.mxu0 %v1416
      %1432 = vmatprep.subr.bf16.mxu0 0
      %1433 = vmatpush1.bf16.msra.mxu0 0
      %1434 = vmatprep.subr.bf16.mxu0 0
      %1435 = vmatpush1.bf16.msra.mxu0 0
      %1436 = vmatprep.subr.bf16.mxu0 0
      %1437 = vmatpush1.bf16.msra.mxu0 0
      %1438 = vmatprep.subr.bf16.mxu0 0
      %1439 = vmatpush1.bf16.msra.mxu0 0
      %1440 = vmatprep.subr.bf16.mxu0 0
      %1441 = vmatpush1.bf16.msra.mxu0 0
      %1442 = vmatprep.subr.bf16.mxu0 0
      %1443 = vmatpush1.bf16.msra.mxu0 0
      %1444 = vmatprep.subr.bf16.mxu0 0
      %1445 = vmatpush1.bf16.msra.mxu0 0
      %1446 = vmatprep.subr.bf16.mxu0 0
      %1447 = vmatpush1.bf16.msra.mxu0 0
      %1448 = vmatprep.subr.bf16.mxu0 0
      %1449 = vmatpush1.bf16.msra.mxu0 0
      %1450 = vmatprep.subr.bf16.mxu0 0
      %1451 = vmatpush1.bf16.msra.mxu0 0
      %1452 = vmatprep.subr.bf16.mxu0 0
      %1453 = vmatpush1.bf16.msra.mxu0 0
      %1454 = vmatprep.subr.bf16.mxu0 0
      %1455 = vmatpush1.bf16.msra.mxu0 0
      %1456 = vmatprep.mubr.bf16.mxu0 0
      %1457 = vmatmul.mubr.bf16.gmra.mrb[0].mxu0 %v1422
      %v1458 = vpop.f32.mrb[0].mxu0
      %v1459 = vadd.f32 %v1396, %v1458
      %v1460 = vpop.f32.mrb[0].mxu0
      %v1461 = vpop.f32.mrb[0].mxu0
      %v1462 = vpop.f32.mrb[0].mxu0
      %1463 = vdwg.mxu0
      %v1464 = vadd.f32 %v1308, %v1459
      %v1465 = vld [vmem:[%s3 + $0x1e] sm:$0x1]
      %v1466 = vld [vmem:[%s3 + $0x1f] sm:$0x1]
      %v1467 = vsel %vm320, %v1464, 0.0
      %1468 = vadd.xlane.f32.xlu0 %v1467
      %v1469 = vpop.xlane.xlu0 %1468
      %v1470 = vmul.f32 %v1469, %v324
      %v1471 = vsub.f32 %v1464, %v1470
      %v1472 = vmul.f32 %v1471, %v1471
      %v1473 = vsel %vm320, %v1472, 0.0
      %1474 = vadd.xlane.f32.xlu0 %v1473
      %v1475 = vpop.xlane.xlu0 %1474
      %v1476 = vmul.f32 %v1475, %v324
      %v1477 = vadd.f32 %v1476, 1e-12
      %v1478 = vrsqrt.pop %v1477
      %v1479 = vmul.f32 %v1471, %v1478
      %v1480 = vlaneseq
      %v1481 = vshrl.u32 %v1480, 7
      %v1482 = vsub.s32 0, %v1481
      %v1483 = vrot.slane %v1465, %v1482
      %v1484 = vmul.f32 %v1479, %v1483
      %v1485 = vlaneseq
      %v1486 = vshrl.u32 %v1485, 7
      %v1487 = vsub.s32 0, %v1486
      %v1488 = vrot.slane %v1466, %v1487
      %v1489 = vadd.f32 %v1484, %v1488
      %v1490 = vpack.c.bf16 %v1489, %v1489
      %v1491 = vld [vmem:[%s2 + $0xd8] sm:$0xf]
      %v1492 = vld [vmem:[%s2 + $0xdc] sm:$0xf]
      %v1493 = vld [vmem:[%s2 + $0xe0] sm:$0xf]
      %v1494 = vld [vmem:[%s2 + $0xe4] sm:$0xf]
      %v1495 = vld [vmem:[%s3 + $0x20] sm:$0x1]
      %v1496 = vlaneseq
      %v1497 = vshrl.u32 %v1496, 7
      %v1498 = vsub.s32 0, %v1497
      %v1499 = vrot.slane %v1495, %v1498
      %v1504 = vunpack.c.l.b16 %v1491
      %v1505 = vunpack.c.l.b16 %v1492
      %v1506 = vunpack.c.l.b16 %v1493
      %v1507 = vunpack.c.l.b16 %v1494
      %v1508 = vpack.c.b16 %v1505, %v1504
      %v1509 = vpack.c.b16 %v1507, %v1506
      %v1513 = vsel %vm320, %v1490, 0
      %1515 = vmatprep.subr.bf16.mxu0 0
      %1516 = vmatpush1.bf16.msra.mxu0 %v1508
      %1517 = vmatprep.subr.bf16.mxu0 0
      %1518 = vmatpush1.bf16.msra.mxu0 %v1509
      %1519 = vmatprep.subr.bf16.mxu0 0
      %1520 = vmatpush1.bf16.msra.mxu0 0
      %1521 = vmatprep.subr.bf16.mxu0 0
      %1522 = vmatpush1.bf16.msra.mxu0 0
      %1523 = vmatprep.subr.bf16.mxu0 0
      %1524 = vmatpush1.bf16.msra.mxu0 0
      %1525 = vmatprep.subr.bf16.mxu0 0
      %1526 = vmatpush1.bf16.msra.mxu0 0
      %1527 = vmatprep.subr.bf16.mxu0 0
      %1528 = vmatpush1.bf16.msra.mxu0 0
      %1529 = vmatprep.subr.bf16.mxu0 0
      %1530 = vmatpush1.bf16.msra.mxu0 0
      %1531 = vmatprep.subr.bf16.mxu0 0
      %1532 = vmatpush1.bf16.msra.mxu0 0
      %1533 = vmatprep.subr.bf16.mxu0 0
      %1534 = vmatpush1.bf16.msra.mxu0 0
      %1535 = vmatprep.subr.bf16.mxu0 0
      %1536 = vmatpush1.bf16.msra.mxu0 0
      %1537 = vmatprep.subr.bf16.mxu0 0
      %1538 = vmatpush1.bf16.msra.mxu0 0
      %1539 = vmatprep.subr.bf16.mxu0 0
      %1540 = vmatpush1.bf16.msra.mxu0 0
      %1541 = vmatprep.subr.bf16.mxu0 0
      %1542 = vmatpush1.bf16.msra.mxu0 0
      %1543 = vmatprep.subr.bf16.mxu0 0
      %1544 = vmatpush1.bf16.msra.mxu0 0
      %1545 = vmatprep.subr.bf16.mxu0 0
      %1546 = vmatpush1.bf16.msra.mxu0 0
      %1547 = vmatprep.mubr.bf16.mxu0 0
      %1548 = vmatmul.mubr.bf16.gmra.mrb[0].mxu0 %v1513
      %v1549 = vpop.f32.mrb[0].mxu0
      %v1550 = vadd.f32 %v1499, %v1549
      %v1551 = vpop.f32.mrb[0].mxu0
      %v1552 = vpop.f32.mrb[0].mxu0
      %v1553 = vpop.f32.mrb[0].mxu0
      %1554 = vdwg.mxu0
      %1555 = vst [vmem:[%s206] sm:$0xff] %v1550
      %p1556 = scmp.lt.s32.totalorder %s15, 1
      %s1557 = scalar_select %p1556, %s15, 1
      %s1558 = smul.addr %s1557, 8
      %s1559 = scalar_lea.vmem %s4, %s1558
      // Predicated region
      $region37: #{joint_bert_forward.1} parent=35 // pred_check
        %p1560 = pneg %p127
      $region38: #{joint_bert_forward.1} parent=35 // pred_check_branch
        %1562 = sbr.rel (%p1560) target = $region40
      $region39: #{joint_bert_forward.1} parent=35 // pred_region
        _
      $region40: #{joint_bert_forward.1} parent=35 // pred_fallthru
        _
    $region36: #{joint_bert_forward.1} parent=5 // pred_fallthru
      _
    %p1563 = scmp.le.s32.totalorder 2, %s10
    // Predicated region
    $region41: #{joint_bert_forward.1} parent=5 // pred_check
      %p1564 = pneg %p1563
    $region42: #{joint_bert_forward.1} parent=5 // pred_check_branch
      %1566 = sbr.rel (%p1564) target = $region44
    $region43: #{joint_bert_forward.1} parent=5 // pred_region
      %s1567 = ssub.s32 %s10, 2
      // Predicated region
      $region45: #{joint_bert_forward.1} parent=43 // pred_check
        %p1568 = pneg %p133
      $region46: #{joint_bert_forward.1} parent=43 // pred_check_branch
        %1570 = sbr.rel (%p1568) target = $region48
      $region47: #{joint_bert_forward.1} parent=43 // pred_region
        %p1571 = scmp.lt.s32.totalorder %s16, 1
        %s1572 = scalar_select %p1571, %s16, 1
        %s1573 = smul.addr %s1572, 8
        %s1574 = scalar_lea.vmem %s4, %s1573
      $region48: #{joint_bert_forward.1} parent=43 // pred_fallthru
        _
    $region44: #{joint_bert_forward.1} parent=5 // pred_fallthru
      _
  $region6: #{joint_bert_forward.1} parent=0 // loop_footer
    %s14 = sadd.s32 1, %s10
  $region7: #{joint_bert_forward.1} parent=0 // loop_footer_branch
    %9 = sbr.rel target = $region3
  $region8: #{joint_bert_forward.1} parent=0 // loop_exit
    _

</llo_original>
